<compile_context>
chip_gen: v5e
topology: v5e:2x2
jax: 0.10.0
libtpu: 0.0.40
codegen_flags: <defaults>
</compile_context>

<pallas_src>
import functools

import jax
import jax.numpy as jnp
from jax import lax
from jax.experimental import pallas as pl
from jax.experimental.pallas import tpu as pltpu

CFG = dict(channels=3, image_size=16, patch_size=8, dim=32, depth=2,
           heads=4, dim_head=8, mlp_dim=64, num_classes=11)

_LN_EPS = 1e-5
_ROW_TILE_CAP = 256          # tokens per grid step   TODO(synk): per-generation (512 v6e / 256-384 v5e,v7x)
_FFN_HIDDEN_TILE_CAP = 512   # mlp hidden columns per reduction step (real mlp_dim=2048 -> 4 steps)
_HEAD_TILE_CAP = 8           # attention heads per reduction step (real heads=32, dh=32 -> 4 groups of 8)
_VMEM_LIMIT_BYTES = 48 * 1024 * 1024   # > v5e 16 MiB scoped default, < v7x 64 MiB physical


def _mosaic(dims):
    return pltpu.CompilerParams(dimension_semantics=dims,
                                vmem_limit_bytes=_VMEM_LIMIT_BYTES)


def _layernorm_f32(x, g, b, eps):
    mu = jnp.mean(x, axis=-1, keepdims=True)
    var = jnp.mean(jnp.square(x - mu), axis=-1, keepdims=True)
    return (x - mu) * lax.rsqrt(var + eps) * g + b


def _row_tile(m):
    tm = min(m, _ROW_TILE_CAP)
    return tm, pl.cdiv(m, tm)


def _pick_head_tile(heads, dh):
    # Prefer a head-group whose QKV weight column block (ht*dh) is a multiple of 128 lanes
    # (lane-dense blocks, legal sub-tiling). Otherwise process all heads per step.
    for ht in range(min(_HEAD_TILE_CAP, heads), 0, -1):
        if heads % ht == 0 and (ht * dh) % 128 == 0:
            return ht
    return heads


# ----------------------------------------------------------------------------- kernels

def _patch_embed_kernel(x_ref, g1_ref, b1_ref, w_ref, bias_ref, g2_ref, b2_ref, o_ref, *, eps):
    # LN(patch_dim) -> Linear -> LN(dim), fused.  (emb dropout is identity in eval)
    x = x_ref[...].astype(jnp.float32)
    xn = _layernorm_f32(x, g1_ref[...], b1_ref[...], eps)
    h = jnp.dot(xn.astype(jnp.bfloat16), w_ref[...],
                preferred_element_type=jnp.float32) + bias_ref[...]
    o_ref[...] = _layernorm_f32(h, g2_ref[...], b2_ref[...], eps).astype(o_ref.dtype)


def _attn_block_kernel(t_ref, g_ref, b_ref, wq_ref, wk_ref, wv_ref, wo_ref, bo_ref,
                       o_ref, acc_ref, *, ht, dh, eps):
    # One batch element x one head-group per grid step:
    #   LN1 -> QKV projection (scale folded into wq) -> softmax(QK^T)V
    #   -> lane-dense merge-heads -> single out-proj matmul accumulated into acc.
    hg = pl.program_id(1)
    x = t_ref[0].astype(jnp.float32)                       # (N, dim)

    @pl.when(hg == 0)
    def _():
        acc_ref[...] = x + bo_ref[...]                     # residual + out-proj bias

    xn = _layernorm_f32(x, g_ref[...], b_ref[...], eps).astype(jnp.bfloat16)
    n = xn.shape[0]

    q = jnp.dot(xn, wq_ref[...], preferred_element_type=jnp.float32)   # (N, ht*dh)
    k = jnp.dot(xn, wk_ref[...], preferred_element_type=jnp.float32)
    v = jnp.dot(xn, wv_ref[...], preferred_element_type=jnp.float32)

    qh = q.reshape(n, ht, dh).transpose(1, 0, 2)           # (ht, N, dh)
    kh = k.reshape(n, ht, dh).transpose(1, 0, 2)
    vh = v.reshape(n, ht, dh).transpose(1, 0, 2)

    s = jnp.einsum('hqd,hkd->hqk', qh.astype(jnp.bfloat16), kh.astype(jnp.bfloat16),
                   preferred_element_type=jnp.float32)     # (ht, N, N) f32
    m = jnp.max(s, axis=-1, keepdims=True)
    p = jnp.exp(s - m)
    p = p / jnp.sum(p, axis=-1, keepdims=True)             # exact softmax
    o = jnp.einsum('hqk,hkd->hqd', p.astype(jnp.bfloat16), vh.astype(jnp.bfloat16),
                   preferred_element_type=jnp.float32)     # (ht, N, dh)

    # merge heads into a lane-dense (N, ht*dh) slab, then ONE K=ht*dh out-proj matmul
    om = o.transpose(1, 0, 2).reshape(n, ht * dh)
    acc_ref[...] += jnp.dot(om.astype(jnp.bfloat16), wo_ref[...],
                            preferred_element_type=jnp.float32)

    @pl.when(hg == pl.num_programs(1) - 1)
    def _():
        o_ref[0] = acc_ref[...].astype(o_ref.dtype)


def _ffn_block_kernel(x_ref, g_ref, b_ref, w1_ref, b1_ref, w2_ref, b2_ref, o_ref, acc_ref, *, eps):
    # LN -> Linear -> exact erf GELU -> Linear -> + residual, hidden dim tiled as a reduction.
    j = pl.program_id(1)
    x = x_ref[...].astype(jnp.float32)

    @pl.when(j == 0)
    def _():
        acc_ref[...] = x + b2_ref[...]                     # residual + 2nd-linear bias

    xn = _layernorm_f32(x, g_ref[...], b_ref[...], eps)
    h = jnp.dot(xn.astype(jnp.bfloat16), w1_ref[...],
                preferred_element_type=jnp.float32) + b1_ref[...]
    h = 0.5 * h * (1.0 + lax.erf(h * 0.7071067811865476))  # matches nn.GELU (exact)
    acc_ref[...] += jnp.dot(h.astype(jnp.bfloat16), w2_ref[...],
                            preferred_element_type=jnp.float32)

    @pl.when(j == pl.num_programs(1) - 1)
    def _():
        o_ref[...] = acc_ref[...].astype(o_ref.dtype)


def _ln_head_kernel(x_ref, g_ref, b_ref, w_ref, bias_ref, o_ref, *, eps):
    # final LN + classification head (lane-dense 128-padded output).
    x = x_ref[...].astype(jnp.float32)
    xn = _layernorm_f32(x, g_ref[...], b_ref[...], eps)
    o = jnp.dot(xn.astype(jnp.bfloat16), w_ref[...], preferred_element_type=jnp.float32)
    o_ref[...] = (o + bias_ref[...]).astype(o_ref.dtype)


# ----------------------------------------------------------------------------- wrappers

def pallas_patch_embed(x, pp):
    M, P = x.shape
    D = pp['w'].shape[1]
    tm, nr = _row_tile(M)
    return pl.pallas_call(
        functools.partial(_patch_embed_kernel, eps=_LN_EPS),
        out_shape=jax.ShapeDtypeStruct((M, D), jnp.bfloat16),
        grid=(nr,),
        in_specs=[pl.BlockSpec((tm, P), lambda i: (i, 0)),
                  pl.BlockSpec((1, P), lambda i: (0, 0)),
                  pl.BlockSpec((1, P), lambda i: (0, 0)),
                  pl.BlockSpec((P, D), lambda i: (0, 0)),
                  pl.BlockSpec((1, D), lambda i: (0, 0)),
                  pl.BlockSpec((1, D), lambda i: (0, 0)),
                  pl.BlockSpec((1, D), lambda i: (0, 0))],
        out_specs=pl.BlockSpec((tm, D), lambda i: (i, 0)),
        compiler_params=_mosaic(("parallel",)),
    )(x, pp['ln1_g'], pp['ln1_b'], pp['w'], pp['b'], pp['ln2_g'], pp['ln2_b'])


def pallas_attn_block(t, lp, heads, dh, ht):
    B, N, dim = t.shape
    hg = heads // ht
    gd = ht * dh
    return pl.pallas_call(
        functools.partial(_attn_block_kernel, ht=ht, dh=dh, eps=_LN_EPS),
        out_shape=jax.ShapeDtypeStruct((B, N, dim), t.dtype),
        grid=(B, hg),
        in_specs=[pl.BlockSpec((1, N, dim), lambda b, g: (b, 0, 0)),
                  pl.BlockSpec((1, dim), lambda b, g: (0, 0)),
                  pl.BlockSpec((1, dim), lambda b, g: (0, 0)),
                  pl.BlockSpec((dim, gd), lambda b, g: (0, g)),
                  pl.BlockSpec((dim, gd), lambda b, g: (0, g)),
                  pl.BlockSpec((dim, gd), lambda b, g: (0, g)),
                  pl.BlockSpec((gd, dim), lambda b, g: (g, 0)),
                  pl.BlockSpec((1, dim), lambda b, g: (0, 0))],
        out_specs=pl.BlockSpec((1, N, dim), lambda b, g: (b, 0, 0)),
        scratch_shapes=[pltpu.VMEM((N, dim), jnp.float32)],
        compiler_params=_mosaic(("parallel", "arbitrary")),
    )(t, lp['ln1_g'], lp['ln1_b'], lp['wq'], lp['wk'], lp['wv'], lp['w_out'], lp['b_out'])


def pallas_ffn_block(x, lp):
    M, D = x.shape
    H = lp['w1'].shape[1]
    tm, nr = _row_tile(M)
    th = min(H, _FFN_HIDDEN_TILE_CAP)
    assert H % th == 0
    nh = H // th
    return pl.pallas_call(
        functools.partial(_ffn_block_kernel, eps=_LN_EPS),
        out_shape=jax.ShapeDtypeStruct((M, D), x.dtype),
        grid=(nr, nh),
        in_specs=[pl.BlockSpec((tm, D), lambda i, j: (i, 0)),
                  pl.BlockSpec((1, D), lambda i, j: (0, 0)),
                  pl.BlockSpec((1, D), lambda i, j: (0, 0)),
                  pl.BlockSpec((D, th), lambda i, j: (0, j)),
                  pl.BlockSpec((1, th), lambda i, j: (0, j)),
                  pl.BlockSpec((th, D), lambda i, j: (j, 0)),
                  pl.BlockSpec((1, D), lambda i, j: (0, 0))],
        out_specs=pl.BlockSpec((tm, D), lambda i, j: (i, 0)),
        scratch_shapes=[pltpu.VMEM((tm, D), jnp.float32)],
        compiler_params=_mosaic(("parallel", "arbitrary")),
    )(x, lp['ln2_g'], lp['ln2_b'], lp['w1'], lp['b1'], lp['w2'], lp['b2'])


def pallas_ln_head(x, g, b, w, bias):
    M, D = x.shape
    Np = w.shape[1]
    tm, nr = _row_tile(M)
    return pl.pallas_call(
        functools.partial(_ln_head_kernel, eps=_LN_EPS),
        out_shape=jax.ShapeDtypeStruct((M, Np), jnp.float32),
        grid=(nr,),
        in_specs=[pl.BlockSpec((tm, D), lambda i: (i, 0)),
                  pl.BlockSpec((1, D), lambda i: (0, 0)),
                  pl.BlockSpec((1, D), lambda i: (0, 0)),
                  pl.BlockSpec((D, Np), lambda i: (0, 0)),
                  pl.BlockSpec((1, Np), lambda i: (0, 0))],
        out_specs=pl.BlockSpec((tm, Np), lambda i: (i, 0)),
        compiler_params=_mosaic(("parallel",)),
    )(x, g, b, w, bias)


# ----------------------------------------------------------------------------- params

def init_params(key, cfg):
    C, p, dim = cfg['channels'], cfg['patch_size'], cfg['dim']
    patch_dim = C * p * p
    n = (cfg['image_size'] // p) ** 2
    inner = cfg['heads'] * cfg['dim_head']
    keys = iter(jax.random.split(key, 64))

    def nrm(shape, std=0.02):
        return std * jax.random.normal(next(keys), shape, jnp.float32)

    params = {
        'patch_ln1_g': jnp.ones((patch_dim,), jnp.float32),
        'patch_ln1_b': jnp.zeros((patch_dim,), jnp.float32),
        'patch_w': nrm((patch_dim, dim)),
        'patch_b': jnp.zeros((dim,), jnp.float32),
        'patch_ln2_g': jnp.ones((dim,), jnp.float32),
        'patch_ln2_b': jnp.zeros((dim,), jnp.float32),
        'cls': nrm((1, 1, dim), std=1.0),
        'pos': nrm((1, n + 1, dim), std=1.0),
        'final_ln_g': jnp.ones((dim,), jnp.float32),
        'final_ln_b': jnp.zeros((dim,), jnp.float32),
        'head_w': nrm((dim, cfg['num_classes'])),
        'head_b': jnp.zeros((cfg['num_classes'],), jnp.float32),
        'layers': [],
    }
    for _ in range(cfg['depth']):
        params['layers'].append({
            'ln1_g': jnp.ones((dim,), jnp.float32),
            'ln1_b': jnp.zeros((dim,), jnp.float32),
            'w_qkv': nrm((dim, 3 * inner)),                    # to_qkv has no bias
            'w_out': nrm((inner, dim)),
            'b_out': jnp.zeros((dim,), jnp.float32),
            'ln2_g': jnp.ones((dim,), jnp.float32),
            'ln2_b': jnp.zeros((dim,), jnp.float32),
            'w1': nrm((dim, cfg['mlp_dim'])),
            'b1': jnp.zeros((cfg['mlp_dim'],), jnp.float32),
            'w2': nrm((cfg['mlp_dim'], dim)),
            'b2': jnp.zeros((dim,), jnp.float32),
        })
    return params


def prepare_params(params, cfg):
    """One-time weight prep: bf16 cast, QKV split (scale folded into Q), bias reshapes,
    head weight lane-padding.  Keeps per-forward wrappers free of XLA-side casts/reshapes."""
    dim, heads, dh = cfg['dim'], cfg['heads'], cfg['dim_head']
    inner = heads * dh
    scale = dh ** -0.5
    nc = cfg['num_classes']
    ncp = max(128, ((nc + 127) // 128) * 128)
    P = params['patch_w'].shape[0]
    H = cfg['mlp_dim']
    # TODO(synk): on v7x, weights could additionally be stored fp8 with per-channel scales.

    prep = {
        'patch': {
            'ln1_g': params['patch_ln1_g'].reshape(1, P),
            'ln1_b': params['patch_ln1_b'].reshape(1, P),
            'w': params['patch_w'].astype(jnp.bfloat16),
            'b': params['patch_b'].reshape(1, dim),
            'ln2_g': params['patch_ln2_g'].reshape(1, dim),
            'ln2_b': params['patch_ln2_b'].reshape(1, dim),
        },
        'cls': params['cls'],
        'pos': params['pos'],
        'final_ln_g': params['final_ln_g'].reshape(1, dim),
        'final_ln_b': params['final_ln_b'].reshape(1, dim),
        'head_w': jnp.pad(params['head_w'], ((0, 0), (0, ncp - nc))).astype(jnp.bfloat16),
        'head_b': jnp.pad(params['head_b'], (0, ncp - nc)).reshape(1, ncp),
        'layers': [],
    }
    for lp in params['layers']:
        prep['layers'].append({
            'ln1_g': lp['ln1_g'].reshape(1, dim),
            'ln1_b': lp['ln1_b'].reshape(1, dim),
            'wq': (lp['w_qkv'][:, :inner] * scale).astype(jnp.bfloat16),   # scale folded in
            'wk': lp['w_qkv'][:, inner:2 * inner].astype(jnp.bfloat16),
            'wv': lp['w_qkv'][:, 2 * inner:].astype(jnp.bfloat16),
            'w_out': lp['w_out'].astype(jnp.bfloat16),
            'b_out': lp['b_out'].reshape(1, dim),
            'ln2_g': lp['ln2_g'].reshape(1, dim),
            'ln2_b': lp['ln2_b'].reshape(1, dim),
            'w1': lp['w1'].astype(jnp.bfloat16),
            'b1': lp['b1'].reshape(1, H),
            'w2': lp['w2'].astype(jnp.bfloat16),
            'b2': lp['b2'].reshape(1, dim),
        })
    return prep


# ----------------------------------------------------------------------------- forward

@jax.jit
def vit_forward(prep, x):
    cfg = CFG
    B, C, Himg, Wimg = x.shape
    p = cfg['patch_size']
    dim, heads, dh = cfg['dim'], cfg['heads'], cfg['dim_head']
    gh, gw = Himg // p, Wimg // p
    n = gh * gw
    patch_dim = C * p * p

    # patchify: 'b c (h p1) (w p2) -> b (h w) (p1 p2 c)'
    patches = x.reshape(B, C, gh, p, gw, p).transpose(0, 2, 4, 3, 5, 1).reshape(B * n, patch_dim)

    # fused patch embedding: LN -> Linear -> LN  (dropout is identity in eval), bf16 out
    t = pallas_patch_embed(patches, prep['patch']).reshape(B, n, dim)

    cls = jnp.broadcast_to(prep['cls'], (B, 1, dim))
    t = jnp.concatenate([cls, t.astype(jnp.float32)], axis=1)       # (B, N, dim)
    N = n + 1
    t = (t + prep['pos'][:, :N]).astype(jnp.bfloat16)               # residual stream in bf16

    ht = _pick_head_tile(heads, dh)
    for lp in prep['layers']:
        # fused LN1 + QKV + attention + out-projection + residual (no XLA-side QKV transpose)
        t = pallas_attn_block(t, lp, heads, dh, ht)
        # fused LN2 + GELU MLP (hidden-tiled reduction) + residual
        t = pallas_ffn_block(t.reshape(B * N, dim), lp).reshape(B, N, dim)

    # cls pooling, then fused final LayerNorm + classification head
    # (LN is per-token, so pooling before the final LN is exactly equivalent)
    cls_tok = t[:, 0]                                               # (B, dim) bf16
    logits = pallas_ln_head(cls_tok, prep['final_ln_g'], prep['final_ln_b'],
                            prep['head_w'], prep['head_b'])
    return logits[:, :cfg['num_classes']]


def custom_vit_forward(prep, x, label, cat_label=None, enable_mixup=False, training=False):
    """Mirrors CustomViT.forward: (output, embeddings, label, cat_label_output, cat_label, gammas)."""
    gammas = []
    # TODO(synk): manifold_mixup / manifold_cutmix branch (enable_mixup=True) not implemented;
    #             default eval path (enable_mixup=False) is reproduced exactly.
    output = vit_forward(prep, x)
    embeddings = output          # matches the PyTorch module: embeddings = output (the logits)
    cat_label_output = None
    return (output, embeddings, label, cat_label_output, cat_label, gammas)


# ----------------------------------------------------------------------------- main

if __name__ == "__main__":
    key = jax.random.PRNGKey(0)
    kx, kp = jax.random.split(key)
    B = 2
    x = jax.random.normal(kx, (B, CFG['channels'], CFG['image_size'], CFG['image_size']),
                          jnp.float32)
    label = jnp.array([0, 1], jnp.int32)

    params = init_params(kp, CFG)
    prep = prepare_params(params, CFG)          # one-time bf16 cast / layout prep
    out = custom_vit_forward(prep, x, label)
    jax.block_until_ready(out[0])

    assert out[0].shape == (B, CFG['num_classes'])
    assert out[1].shape == (B, CFG['num_classes'])
    print("KERNEL_OK")
</pallas_src>

<mosaic_0001>
module attributes {stable_mosaic.version = 11 : i64} {
  func.func @_patch_embed_kernel(%arg0: i32, %arg1: memref<8x192xf32, #tpu.memory_space<vmem>>, %arg2: memref<1x192xf32, #tpu.memory_space<vmem>>, %arg3: memref<1x192xf32, #tpu.memory_space<vmem>>, %arg4: memref<192x32xbf16, #tpu.memory_space<vmem>>, %arg5: memref<1x32xf32, #tpu.memory_space<vmem>>, %arg6: memref<1x32xf32, #tpu.memory_space<vmem>>, %arg7: memref<1x32xf32, #tpu.memory_space<vmem>>, %arg8: memref<8x32xbf16, #tpu.memory_space<vmem>>) attributes {dimension_semantics = [#tpu.dimension_semantics<parallel>], iteration_bounds = array<i64: 1>, scalar_prefetch = 0 : i64, scratch_operands = 0 : i64, tpu.core_type = #tpu.core_type<tc>, window_params = [{transform_indices = @transform_0, window_bounds = array<i64: 8, 192>}, {pipeline_mode = #tpu.pipeline_mode<synchronous>, transform_indices = @transform_1, window_bounds = array<i64: 1, 192>}, {pipeline_mode = #tpu.pipeline_mode<synchronous>, transform_indices = @transform_2, window_bounds = array<i64: 1, 192>}, {pipeline_mode = #tpu.pipeline_mode<synchronous>, transform_indices = @transform_3, window_bounds = array<i64: 192, 32>}, {pipeline_mode = #tpu.pipeline_mode<synchronous>, transform_indices = @transform_4, window_bounds = array<i64: 1, 32>}, {pipeline_mode = #tpu.pipeline_mode<synchronous>, transform_indices = @transform_5, window_bounds = array<i64: 1, 32>}, {pipeline_mode = #tpu.pipeline_mode<synchronous>, transform_indices = @transform_6, window_bounds = array<i64: 1, 32>}, {transform_indices = @transform_7, window_bounds = array<i64: 8, 32>}]} {
    %c0 = arith.constant 0 : index
    %c0_0 = arith.constant 0 : index
    %0 = vector.load %arg1[%c0, %c0_0] : memref<8x192xf32, #tpu.memory_space<vmem>>, vector<8x192xf32>
    %c0_1 = arith.constant 0 : index
    %c0_2 = arith.constant 0 : index
    %1 = vector.load %arg2[%c0_1, %c0_2] : memref<1x192xf32, #tpu.memory_space<vmem>>, vector<1x192xf32>
    %c0_3 = arith.constant 0 : index
    %c0_4 = arith.constant 0 : index
    %2 = vector.load %arg3[%c0_3, %c0_4] : memref<1x192xf32, #tpu.memory_space<vmem>>, vector<1x192xf32>
    %cst = arith.constant dense<0.000000e+00> : vector<8xf32>
    %3 = vector.multi_reduction <add>, %0, %cst [1] : vector<8x192xf32> to vector<8xf32>
    %4 = vector.shape_cast %3 : vector<8xf32> to vector<8x1xf32>
    %cst_5 = arith.constant 1.920000e+02 : f32
    %5 = vector.broadcast %cst_5 : f32 to vector<8x1xf32>
    %6 = arith.divf %4, %5 : vector<8x1xf32>
    %7 = vector.broadcast %6 : vector<8x1xf32> to vector<8x192xf32>
    %8 = arith.subf %0, %7 : vector<8x192xf32>
    %9 = arith.mulf %8, %8 : vector<8x192xf32>
    %cst_6 = arith.constant dense<0.000000e+00> : vector<8xf32>
    %10 = vector.multi_reduction <add>, %9, %cst_6 [1] : vector<8x192xf32> to vector<8xf32>
    %11 = vector.shape_cast %10 : vector<8xf32> to vector<8x1xf32>
    %cst_7 = arith.constant 1.920000e+02 : f32
    %12 = vector.broadcast %cst_7 : f32 to vector<8x1xf32>
    %13 = arith.divf %11, %12 : vector<8x1xf32>
    %14 = vector.broadcast %6 : vector<8x1xf32> to vector<8x192xf32>
    %15 = arith.subf %0, %14 : vector<8x192xf32>
    %cst_8 = arith.constant 9.99999974E-6 : f32
    %16 = vector.broadcast %cst_8 : f32 to vector<8x1xf32>
    %17 = arith.addf %13, %16 : vector<8x1xf32>
    %18 = math.rsqrt %17 : vector<8x1xf32>
    %19 = vector.broadcast %18 : vector<8x1xf32> to vector<8x192xf32>
    %20 = arith.mulf %15, %19 : vector<8x192xf32>
    %21 = vector.broadcast %1 : vector<1x192xf32> to vector<8x192xf32>
    %22 = arith.mulf %20, %21 : vector<8x192xf32>
    %23 = vector.broadcast %2 : vector<1x192xf32> to vector<8x192xf32>
    %24 = arith.addf %22, %23 : vector<8x192xf32>
    %25 = arith.truncf %24 : vector<8x192xf32> to vector<8x192xbf16>
    %c0_9 = arith.constant 0 : index
    %c0_10 = arith.constant 0 : index
    %26 = vector.load %arg4[%c0_9, %c0_10] : memref<192x32xbf16, #tpu.memory_space<vmem>>, vector<192x32xbf16>
    %cst_11 = arith.constant dense<0.000000e+00> : vector<8x32xf32>
    %27 = tpu.matmul %25, %26, %cst_11 {dimension_numbers = #tpu.dot_dimension_numbers<[1], [0], [0], [1], [0, 0, 1, 1], [], []>} : vector<8x192xbf16>, vector<192x32xbf16>, vector<8x32xf32> -> vector<8x32xf32>
    %c0_12 = arith.constant 0 : index
    %c0_13 = arith.constant 0 : index
    %28 = vector.load %arg5[%c0_12, %c0_13] : memref<1x32xf32, #tpu.memory_space<vmem>>, vector<1x32xf32>
    %29 = vector.broadcast %28 : vector<1x32xf32> to vector<8x32xf32>
    %30 = arith.addf %27, %29 : vector<8x32xf32>
    %c0_14 = arith.constant 0 : index
    %c0_15 = arith.constant 0 : index
    %31 = vector.load %arg6[%c0_14, %c0_15] : memref<1x32xf32, #tpu.memory_space<vmem>>, vector<1x32xf32>
    %c0_16 = arith.constant 0 : index
    %c0_17 = arith.constant 0 : index
    %32 = vector.load %arg7[%c0_16, %c0_17] : memref<1x32xf32, #tpu.memory_space<vmem>>, vector<1x32xf32>
    %cst_18 = arith.constant dense<0.000000e+00> : vector<8xf32>
    %33 = vector.multi_reduction <add>, %30, %cst_18 [1] : vector<8x32xf32> to vector<8xf32>
    %34 = vector.shape_cast %33 : vector<8xf32> to vector<8x1xf32>
    %cst_19 = arith.constant 3.200000e+01 : f32
    %35 = vector.broadcast %cst_19 : f32 to vector<8x1xf32>
    %36 = arith.divf %34, %35 : vector<8x1xf32>
    %37 = vector.broadcast %36 : vector<8x1xf32> to vector<8x32xf32>
    %38 = arith.subf %30, %37 : vector<8x32xf32>
    %39 = arith.mulf %38, %38 : vector<8x32xf32>
    %cst_20 = arith.constant dense<0.000000e+00> : vector<8xf32>
    %40 = vector.multi_reduction <add>, %39, %cst_20 [1] : vector<8x32xf32> to vector<8xf32>
    %41 = vector.shape_cast %40 : vector<8xf32> to vector<8x1xf32>
    %cst_21 = arith.constant 3.200000e+01 : f32
    %42 = vector.broadcast %cst_21 : f32 to vector<8x1xf32>
    %43 = arith.divf %41, %42 : vector<8x1xf32>
    %44 = vector.broadcast %36 : vector<8x1xf32> to vector<8x32xf32>
    %45 = arith.subf %30, %44 : vector<8x32xf32>
    %cst_22 = arith.constant 9.99999974E-6 : f32
    %46 = vector.broadcast %cst_22 : f32 to vector<8x1xf32>
    %47 = arith.addf %43, %46 : vector<8x1xf32>
    %48 = math.rsqrt %47 : vector<8x1xf32>
    %49 = vector.broadcast %48 : vector<8x1xf32> to vector<8x32xf32>
    %50 = arith.mulf %45, %49 : vector<8x32xf32>
    %51 = vector.broadcast %31 : vector<1x32xf32> to vector<8x32xf32>
    %52 = arith.mulf %50, %51 : vector<8x32xf32>
    %53 = vector.broadcast %32 : vector<1x32xf32> to vector<8x32xf32>
    %54 = arith.addf %52, %53 : vector<8x32xf32>
    %55 = arith.truncf %54 : vector<8x32xf32> to vector<8x32xbf16>
    %c0_23 = arith.constant 0 : index
    %c0_24 = arith.constant 0 : index
    %56 = vector.load %arg8[%c0_23, %c0_24] : memref<8x32xbf16, #tpu.memory_space<vmem>>, vector<8x32xbf16>
    tpu.vector_store %arg8[%c0_23, %c0_24], %55 {strides = array<i32>} : memref<8x32xbf16, #tpu.memory_space<vmem>>, vector<8x32xbf16>,
    return
  }
  func.func @transform_0(%arg0: i32) -> (i32, i32) {
    %c0_i32 = arith.constant 0 : i32
    %c0_i32_0 = arith.constant 0 : i32
    return %arg0, %c0_i32 : i32, i32
  }
  func.func @transform_1(%arg0: i32) -> (i32, i32) {
    %c0_i32 = arith.constant 0 : i32
    %c0_i32_0 = arith.constant 0 : i32
    %c0_i32_1 = arith.constant 0 : i32
    return %c0_i32, %c0_i32_0 : i32, i32
  }
  func.func @transform_2(%arg0: i32) -> (i32, i32) {
    %c0_i32 = arith.constant 0 : i32
    %c0_i32_0 = arith.constant 0 : i32
    %c0_i32_1 = arith.constant 0 : i32
    return %c0_i32, %c0_i32_0 : i32, i32
  }
  func.func @transform_3(%arg0: i32) -> (i32, i32) {
    %c0_i32 = arith.constant 0 : i32
    %c0_i32_0 = arith.constant 0 : i32
    %c0_i32_1 = arith.constant 0 : i32
    return %c0_i32, %c0_i32_0 : i32, i32
  }
  func.func @transform_4(%arg0: i32) -> (i32, i32) {
    %c0_i32 = arith.constant 0 : i32
    %c0_i32_0 = arith.constant 0 : i32
    %c0_i32_1 = arith.constant 0 : i32
    return %c0_i32, %c0_i32_0 : i32, i32
  }
  func.func @transform_5(%arg0: i32) -> (i32, i32) {
    %c0_i32 = arith.constant 0 : i32
    %c0_i32_0 = arith.constant 0 : i32
    %c0_i32_1 = arith.constant 0 : i32
    return %c0_i32, %c0_i32_0 : i32, i32
  }
  func.func @transform_6(%arg0: i32) -> (i32, i32) {
    %c0_i32 = arith.constant 0 : i32
    %c0_i32_0 = arith.constant 0 : i32
    %c0_i32_1 = arith.constant 0 : i32
    return %c0_i32, %c0_i32_0 : i32, i32
  }
  func.func @transform_7(%arg0: i32) -> (i32, i32) {
    %c0_i32 = arith.constant 0 : i32
    %c0_i32_0 = arith.constant 0 : i32
    return %arg0, %c0_i32 : i32, i32
  }
}

module attributes {stable_mosaic.version = 11 : i64} {
  func.func @_attn_block_kernel(%arg0: i32, %arg1: i32, %arg2: memref<1x5x32xbf16, #tpu.memory_space<vmem>>, %arg3: memref<1x32xf32, #tpu.memory_space<vmem>>, %arg4: memref<1x32xf32, #tpu.memory_space<vmem>>, %arg5: memref<32x32xbf16, #tpu.memory_space<vmem>>, %arg6: memref<32x32xbf16, #tpu.memory_space<vmem>>, %arg7: memref<32x32xbf16, #tpu.memory_space<vmem>>, %arg8: memref<32x32xbf16, #tpu.memory_space<vmem>>, %arg9: memref<1x32xf32, #tpu.memory_space<vmem>>, %arg10: memref<1x5x32xbf16, #tpu.memory_space<vmem>>, %arg11: memref<5x32xf32, #tpu.memory_space<vmem>>) attributes {dimension_semantics = [#tpu.dimension_semantics<parallel>, #tpu.dimension_semantics<arbitrary>], iteration_bounds = array<i64: 2, 1>, scalar_prefetch = 0 : i64, scratch_operands = 1 : i64, tpu.core_type = #tpu.core_type<tc>, window_params = [{transform_indices = @transform_0, window_bounds = array<i64: 1, 5, 32>}, {pipeline_mode = #tpu.pipeline_mode<synchronous>, transform_indices = @transform_1, window_bounds = array<i64: 1, 32>}, {pipeline_mode = #tpu.pipeline_mode<synchronous>, transform_indices = @transform_2, window_bounds = array<i64: 1, 32>}, {transform_indices = @transform_3, window_bounds = array<i64: 32, 32>}, {transform_indices = @transform_4, window_bounds = array<i64: 32, 32>}, {transform_indices = @transform_5, window_bounds = array<i64: 32, 32>}, {transform_indices = @transform_6, window_bounds = array<i64: 32, 32>}, {pipeline_mode = #tpu.pipeline_mode<synchronous>, transform_indices = @transform_7, window_bounds = array<i64: 1, 32>}, {transform_indices = @transform_8, window_bounds = array<i64: 1, 5, 32>}]} {
    %c0 = arith.constant 0 : index
    %c0_0 = arith.constant 0 : index
    %c0_1 = arith.constant 0 : index
    %0 = vector.load %arg2[%c0, %c0_0, %c0_1] : memref<1x5x32xbf16, #tpu.memory_space<vmem>>, vector<1x5x32xbf16>
    %1 = vector.shape_cast %0 : vector<1x5x32xbf16> to vector<5x32xbf16>
    %2 = arith.extf %1 : vector<5x32xbf16> to vector<5x32xf32>
    %c0_i32 = arith.constant 0 : i32
    %3 = arith.cmpi eq, %arg1, %c0_i32 : i32
    %4 = arith.extui %3 : i1 to i32
    %c0_i32_2 = arith.constant 0 : i32
    %5 = arith.cmpi ne, %4, %c0_i32_2 : i32
    scf.if %5 {
      %c0_33 = arith.constant 0 : index
      %c0_34 = arith.constant 0 : index
      %69 = vector.load %arg9[%c0_33, %c0_34] : memref<1x32xf32, #tpu.memory_space<vmem>>, vector<1x32xf32>
      %70 = vector.broadcast %69 : vector<1x32xf32> to vector<5x32xf32>
      %71 = arith.addf %2, %70 : vector<5x32xf32>
      %c0_35 = arith.constant 0 : index
      %c0_36 = arith.constant 0 : index
      %72 = vector.load %arg11[%c0_35, %c0_36] : memref<5x32xf32, #tpu.memory_space<vmem>>, vector<5x32xf32>
      tpu.vector_store %arg11[%c0_35, %c0_36], %71 {strides = array<i32>} : memref<5x32xf32, #tpu.memory_space<vmem>>, vector<5x32xf32>,
    } else {
    }
    %c0_3 = arith.constant 0 : index
    %c0_4 = arith.constant 0 : index
    %6 = vector.load %arg3[%c0_3, %c0_4] : memref<1x32xf32, #tpu.memory_space<vmem>>, vector<1x32xf32>
    %c0_5 = arith.constant 0 : index
    %c0_6 = arith.constant 0 : index
    %7 = vector.load %arg4[%c0_5, %c0_6] : memref<1x32xf32, #tpu.memory_space<vmem>>, vector<1x32xf32>
    %cst = arith.constant dense<0.000000e+00> : vector<5xf32>
    %8 = vector.multi_reduction <add>, %2, %cst [1] : vector<5x32xf32> to vector<5xf32>
    %9 = vector.shape_cast %8 : vector<5xf32> to vector<5x1xf32>
    %cst_7 = arith.constant 3.200000e+01 : f32
    %10 = vector.broadcast %cst_7 : f32 to vector<5x1xf32>
    %11 = arith.divf %9, %10 : vector<5x1xf32>
    %12 = vector.broadcast %11 : vector<5x1xf32> to vector<5x32xf32>
    %13 = arith.subf %2, %12 : vector<5x32xf32>
    %14 = arith.mulf %13, %13 : vector<5x32xf32>
    %cst_8 = arith.constant dense<0.000000e+00> : vector<5xf32>
    %15 = vector.multi_reduction <add>, %14, %cst_8 [1] : vector<5x32xf32> to vector<5xf32>
    %16 = vector.shape_cast %15 : vector<5xf32> to vector<5x1xf32>
    %cst_9 = arith.constant 3.200000e+01 : f32
    %17 = vector.broadcast %cst_9 : f32 to vector<5x1xf32>
    %18 = arith.divf %16, %17 : vector<5x1xf32>
    %19 = vector.broadcast %11 : vector<5x1xf32> to vector<5x32xf32>
    %20 = arith.subf %2, %19 : vector<5x32xf32>
    %cst_10 = arith.constant 9.99999974E-6 : f32
    %21 = vector.broadcast %cst_10 : f32 to vector<5x1xf32>
    %22 = arith.addf %18, %21 : vector<5x1xf32>
    %23 = math.rsqrt %22 : vector<5x1xf32>
    %24 = vector.broadcast %23 : vector<5x1xf32> to vector<5x32xf32>
    %25 = arith.mulf %20, %24 : vector<5x32xf32>
    %26 = vector.broadcast %6 : vector<1x32xf32> to vector<5x32xf32>
    %27 = arith.mulf %25, %26 : vector<5x32xf32>
    %28 = vector.broadcast %7 : vector<1x32xf32> to vector<5x32xf32>
    %29 = arith.addf %27, %28 : vector<5x32xf32>
    %30 = arith.truncf %29 : vector<5x32xf32> to vector<5x32xbf16>
    %c0_11 = arith.constant 0 : index
    %c0_12 = arith.constant 0 : index
    %31 = vector.load %arg5[%c0_11, %c0_12] : memref<32x32xbf16, #tpu.memory_space<vmem>>, vector<32x32xbf16>
    %cst_13 = arith.constant dense<0.000000e+00> : vector<5x32xf32>
    %32 = tpu.matmul %30, %31, %cst_13 {dimension_numbers = #tpu.dot_dimension_numbers<[1], [0], [0], [1], [0, 0, 1, 1], [], []>} : vector<5x32xbf16>, vector<32x32xbf16>, vector<5x32xf32> -> vector<5x32xf32>
    %c0_14 = arith.constant 0 : index
    %c0_15 = arith.constant 0 : index
    %33 = vector.load %arg6[%c0_14, %c0_15] : memref<32x32xbf16, #tpu.memory_space<vmem>>, vector<32x32xbf16>
    %cst_16 = arith.constant dense<0.000000e+00> : vector<5x32xf32>
    %34 = tpu.matmul %30, %33, %cst_16 {dimension_numbers = #tpu.dot_dimension_numbers<[1], [0], [0], [1], [0, 0, 1, 1], [], []>} : vector<5x32xbf16>, vector<32x32xbf16>, vector<5x32xf32> -> vector<5x32xf32>
    %c0_17 = arith.constant 0 : index
    %c0_18 = arith.constant 0 : index
    %35 = vector.load %arg7[%c0_17, %c0_18] : memref<32x32xbf16, #tpu.memory_space<vmem>>, vector<32x32xbf16>
    %cst_19 = arith.constant dense<0.000000e+00> : vector<5x32xf32>
    %36 = tpu.matmul %30, %35, %cst_19 {dimension_numbers = #tpu.dot_dimension_numbers<[1], [0], [0], [1], [0, 0, 1, 1], [], []>} : vector<5x32xbf16>, vector<32x32xbf16>, vector<5x32xf32> -> vector<5x32xf32>
    %37 = vector.shape_cast %32 : vector<5x32xf32> to vector<5x4x8xf32>
    %38 = tpu.transpose %37, [1, 0, 2] : vector<5x4x8xf32> -> vector<4x5x8xf32>
    %39 = vector.shape_cast %34 : vector<5x32xf32> to vector<5x4x8xf32>
    %40 = tpu.transpose %39, [1, 0, 2] : vector<5x4x8xf32> -> vector<4x5x8xf32>
    %41 = vector.shape_cast %36 : vector<5x32xf32> to vector<5x4x8xf32>
    %42 = tpu.transpose %41, [1, 0, 2] : vector<5x4x8xf32> -> vector<4x5x8xf32>
    %43 = arith.truncf %38 : vector<4x5x8xf32> to vector<4x5x8xbf16>
    %44 = arith.truncf %40 : vector<4x5x8xf32> to vector<4x5x8xbf16>
    "tpu.trace_start"() <{level = 10 : i32, message = "hqd,hkd->hqk"}> : () -> ()
    %cst_20 = arith.constant dense<0.000000e+00> : vector<4x5x5xf32>
    %45 = tpu.matmul %43, %44, %cst_20 {dimension_numbers = #tpu.dot_dimension_numbers<[2], [2], [1], [1], [0, 0, 0, 1, 1, 1], [0], [0]>} : vector<4x5x8xbf16>, vector<4x5x8xbf16>, vector<4x5x5xf32> -> vector<4x5x5xf32>
    "tpu.trace_stop"() : () -> ()
    %cst_21 = arith.constant dense<0xFF800000> : vector<4x5xf32>
    %46 = vector.multi_reduction <maximumf>, %45, %cst_21 [2] : vector<4x5x5xf32> to vector<4x5xf32>
    %47 = vector.shape_cast %46 : vector<4x5xf32> to vector<4x5x1xf32>
    %48 = vector.broadcast %47 : vector<4x5x1xf32> to vector<4x5x5xf32>
    %49 = arith.subf %45, %48 : vector<4x5x5xf32>
    %50 = math.exp %49 : vector<4x5x5xf32>
    %cst_22 = arith.constant dense<0.000000e+00> : vector<4x5xf32>
    %51 = vector.multi_reduction <add>, %50, %cst_22 [2] : vector<4x5x5xf32> to vector<4x5xf32>
    %52 = vector.shape_cast %51 : vector<4x5xf32> to vector<4x5x1xf32>
    %53 = vector.broadcast %52 : vector<4x5x1xf32> to vector<4x5x5xf32>
    %54 = arith.divf %50, %53 : vector<4x5x5xf32>
    %55 = arith.truncf %54 : vector<4x5x5xf32> to vector<4x5x5xbf16>
    %56 = arith.truncf %42 : vector<4x5x8xf32> to vector<4x5x8xbf16>
    "tpu.trace_start"() <{level = 10 : i32, message = "hqk,hkd->hqd"}> : () -> ()
    %cst_23 = arith.constant dense<0.000000e+00> : vector<4x5x8xf32>
    %57 = tpu.matmul %55, %56, %cst_23 {dimension_numbers = #tpu.dot_dimension_numbers<[2], [1], [1], [2], [0, 0, 0, 1, 1, 2], [0], [0]>} : vector<4x5x5xbf16>, vector<4x5x8xbf16>, vector<4x5x8xf32> -> vector<4x5x8xf32>
    "tpu.trace_stop"() : () -> ()
    %58 = tpu.transpose %57, [1, 0, 2] : vector<4x5x8xf32> -> vector<5x4x8xf32>
    %59 = vector.shape_cast %58 : vector<5x4x8xf32> to vector<5x32xf32>
    %c0_24 = arith.constant 0 : index
    %c0_25 = arith.constant 0 : index
    %60 = vector.load %arg11[%c0_24, %c0_25] : memref<5x32xf32, #tpu.memory_space<vmem>>, vector<5x32xf32>
    %61 = arith.truncf %59 : vector<5x32xf32> to vector<5x32xbf16>
    %c0_26 = arith.constant 0 : index
    %c0_27 = arith.constant 0 : index
    %62 = vector.load %arg8[%c0_26, %c0_27] : memref<32x32xbf16, #tpu.memory_space<vmem>>, vector<32x32xbf16>
    %cst_28 = arith.constant dense<0.000000e+00> : vector<5x32xf32>
    %63 = tpu.matmul %61, %62, %cst_28 {dimension_numbers = #tpu.dot_dimension_numbers<[1], [0], [0], [1], [0, 0, 1, 1], [], []>} : vector<5x32xbf16>, vector<32x32xbf16>, vector<5x32xf32> -> vector<5x32xf32>
    %64 = arith.addf %60, %63 : vector<5x32xf32>
    %c0_29 = arith.constant 0 : index
    %c0_30 = arith.constant 0 : index
    %65 = vector.load %arg11[%c0_29, %c0_30] : memref<5x32xf32, #tpu.memory_space<vmem>>, vector<5x32xf32>
    tpu.vector_store %arg11[%c0_29, %c0_30], %64 {strides = array<i32>} : memref<5x32xf32, #tpu.memory_space<vmem>>, vector<5x32xf32>,
    %c0_i32_31 = arith.constant 0 : i32
    %66 = arith.cmpi eq, %arg1, %c0_i32_31 : i32
    %67 = arith.extui %66 : i1 to i32
    %c0_i32_32 = arith.constant 0 : i32
    %68 = arith.cmpi ne, %67, %c0_i32_32 : i32
    scf.if %68 {
      %c0_33 = arith.constant 0 : index
      %c0_34 = arith.constant 0 : index
      %69 = vector.load %arg11[%c0_33, %c0_34] : memref<5x32xf32, #tpu.memory_space<vmem>>, vector<5x32xf32>
      %70 = arith.truncf %69 : vector<5x32xf32> to vector<5x32xbf16>
      %c0_35 = arith.constant 0 : index
      %c0_36 = arith.constant 0 : index
      %c0_37 = arith.constant 0 : index
      %71 = vector.load %arg10[%c0_35, %c0_36, %c0_37] : memref<1x5x32xbf16, #tpu.memory_space<vmem>>, vector<1x5x32xbf16>
      %72 = vector.shape_cast %71 : vector<1x5x32xbf16> to vector<5x32xbf16>
      %73 = vector.shape_cast %70 : vector<5x32xbf16> to vector<1x5x32xbf16>
      tpu.vector_store %arg10[%c0_35, %c0_36, %c0_37], %73 {strides = array<i32>} : memref<1x5x32xbf16, #tpu.memory_space<vmem>>, vector<1x5x32xbf16>,
    } else {
    }
    return
  }
  func.func @transform_0(%arg0: i32, %arg1: i32) -> (i32, i32, i32) {
    %c0_i32 = arith.constant 0 : i32
    %c0_i32_0 = arith.constant 0 : i32
    %c0_i32_1 = arith.constant 0 : i32
    return %arg0, %c0_i32, %c0_i32_0 : i32, i32, i32
  }
  func.func @transform_1(%arg0: i32, %arg1: i32) -> (i32, i32) {
    %c0_i32 = arith.constant 0 : i32
    %c0_i32_0 = arith.constant 0 : i32
    %c0_i32_1 = arith.constant 0 : i32
    return %c0_i32, %c0_i32_0 : i32, i32
  }
  func.func @transform_2(%arg0: i32, %arg1: i32) -> (i32, i32) {
    %c0_i32 = arith.constant 0 : i32
    %c0_i32_0 = arith.constant 0 : i32
    %c0_i32_1 = arith.constant 0 : i32
    return %c0_i32, %c0_i32_0 : i32, i32
  }
  func.func @transform_3(%arg0: i32, %arg1: i32) -> (i32, i32) {
    %c0_i32 = arith.constant 0 : i32
    %c0_i32_0 = arith.constant 0 : i32
    return %c0_i32, %arg1 : i32, i32
  }
  func.func @transform_4(%arg0: i32, %arg1: i32) -> (i32, i32) {
    %c0_i32 = arith.constant 0 : i32
    %c0_i32_0 = arith.constant 0 : i32
    return %c0_i32, %arg1 : i32, i32
  }
  func.func @transform_5(%arg0: i32, %arg1: i32) -> (i32, i32) {
    %c0_i32 = arith.constant 0 : i32
    %c0_i32_0 = arith.constant 0 : i32
    return %c0_i32, %arg1 : i32, i32
  }
  func.func @transform_6(%arg0: i32, %arg1: i32) -> (i32, i32) {
    %c0_i32 = arith.constant 0 : i32
    %c0_i32_0 = arith.constant 0 : i32
    return %arg1, %c0_i32 : i32, i32
  }
  func.func @transform_7(%arg0: i32, %arg1: i32) -> (i32, i32) {
    %c0_i32 = arith.constant 0 : i32
    %c0_i32_0 = arith.constant 0 : i32
    %c0_i32_1 = arith.constant 0 : i32
    return %c0_i32, %c0_i32_0 : i32, i32
  }
  func.func @transform_8(%arg0: i32, %arg1: i32) -> (i32, i32, i32) {
    %c0_i32 = arith.constant 0 : i32
    %c0_i32_0 = arith.constant 0 : i32
    %c0_i32_1 = arith.constant 0 : i32
    return %arg0, %c0_i32, %c0_i32_0 : i32, i32, i32
  }
}

module attributes {stable_mosaic.version = 11 : i64} {
  func.func @_ffn_block_kernel(%arg0: i32, %arg1: i32, %arg2: memref<10x32xbf16, #tpu.memory_space<vmem>>, %arg3: memref<1x32xf32, #tpu.memory_space<vmem>>, %arg4: memref<1x32xf32, #tpu.memory_space<vmem>>, %arg5: memref<32x64xbf16, #tpu.memory_space<vmem>>, %arg6: memref<1x64xf32, #tpu.memory_space<vmem>>, %arg7: memref<64x32xbf16, #tpu.memory_space<vmem>>, %arg8: memref<1x32xf32, #tpu.memory_space<vmem>>, %arg9: memref<10x32xbf16, #tpu.memory_space<vmem>>, %arg10: memref<10x32xf32, #tpu.memory_space<vmem>>) attributes {dimension_semantics = [#tpu.dimension_semantics<parallel>, #tpu.dimension_semantics<arbitrary>], iteration_bounds = array<i64: 1, 1>, scalar_prefetch = 0 : i64, scratch_operands = 1 : i64, tpu.core_type = #tpu.core_type<tc>, window_params = [{transform_indices = @transform_0, window_bounds = array<i64: 10, 32>}, {pipeline_mode = #tpu.pipeline_mode<synchronous>, transform_indices = @transform_1, window_bounds = array<i64: 1, 32>}, {pipeline_mode = #tpu.pipeline_mode<synchronous>, transform_indices = @transform_2, window_bounds = array<i64: 1, 32>}, {transform_indices = @transform_3, window_bounds = array<i64: 32, 64>}, {transform_indices = @transform_4, window_bounds = array<i64: 1, 64>}, {transform_indices = @transform_5, window_bounds = array<i64: 64, 32>}, {pipeline_mode = #tpu.pipeline_mode<synchronous>, transform_indices = @transform_6, window_bounds = array<i64: 1, 32>}, {transform_indices = @transform_7, window_bounds = array<i64: 10, 32>}]} {
    %c0 = arith.constant 0 : index
    %c0_0 = arith.constant 0 : index
    %0 = vector.load %arg2[%c0, %c0_0] : memref<10x32xbf16, #tpu.memory_space<vmem>>, vector<10x32xbf16>
    %1 = arith.extf %0 : vector<10x32xbf16> to vector<10x32xf32>
    %c0_i32 = arith.constant 0 : i32
    %2 = arith.cmpi eq, %arg1, %c0_i32 : i32
    %3 = arith.extui %2 : i1 to i32
    %c0_i32_1 = arith.constant 0 : i32
    %4 = arith.cmpi ne, %3, %c0_i32_1 : i32
    scf.if %4 {
      %c0_27 = arith.constant 0 : index
      %c0_28 = arith.constant 0 : index
      %52 = vector.load %arg8[%c0_27, %c0_28] : memref<1x32xf32, #tpu.memory_space<vmem>>, vector<1x32xf32>
      %53 = vector.broadcast %52 : vector<1x32xf32> to vector<10x32xf32>
      %54 = arith.addf %1, %53 : vector<10x32xf32>
      %c0_29 = arith.constant 0 : index
      %c0_30 = arith.constant 0 : index
      %55 = vector.load %arg10[%c0_29, %c0_30] : memref<10x32xf32, #tpu.memory_space<vmem>>, vector<10x32xf32>
      tpu.vector_store %arg10[%c0_29, %c0_30], %54 {strides = array<i32>} : memref<10x32xf32, #tpu.memory_space<vmem>>, vector<10x32xf32>,
    } else {
    }
    %c0_2 = arith.constant 0 : index
    %c0_3 = arith.constant 0 : index
    %5 = vector.load %arg3[%c0_2, %c0_3] : memref<1x32xf32, #tpu.memory_space<vmem>>, vector<1x32xf32>
    %c0_4 = arith.constant 0 : index
    %c0_5 = arith.constant 0 : index
    %6 = vector.load %arg4[%c0_4, %c0_5] : memref<1x32xf32, #tpu.memory_space<vmem>>, vector<1x32xf32>
    %cst = arith.constant dense<0.000000e+00> : vector<10xf32>
    %7 = vector.multi_reduction <add>, %1, %cst [1] : vector<10x32xf32> to vector<10xf32>
    %8 = vector.shape_cast %7 : vector<10xf32> to vector<10x1xf32>
    %cst_6 = arith.constant 3.200000e+01 : f32
    %9 = vector.broadcast %cst_6 : f32 to vector<10x1xf32>
    %10 = arith.divf %8, %9 : vector<10x1xf32>
    %11 = vector.broadcast %10 : vector<10x1xf32> to vector<10x32xf32>
    %12 = arith.subf %1, %11 : vector<10x32xf32>
    %13 = arith.mulf %12, %12 : vector<10x32xf32>
    %cst_7 = arith.constant dense<0.000000e+00> : vector<10xf32>
    %14 = vector.multi_reduction <add>, %13, %cst_7 [1] : vector<10x32xf32> to vector<10xf32>
    %15 = vector.shape_cast %14 : vector<10xf32> to vector<10x1xf32>
    %cst_8 = arith.constant 3.200000e+01 : f32
    %16 = vector.broadcast %cst_8 : f32 to vector<10x1xf32>
    %17 = arith.divf %15, %16 : vector<10x1xf32>
    %18 = vector.broadcast %10 : vector<10x1xf32> to vector<10x32xf32>
    %19 = arith.subf %1, %18 : vector<10x32xf32>
    %cst_9 = arith.constant 9.99999974E-6 : f32
    %20 = vector.broadcast %cst_9 : f32 to vector<10x1xf32>
    %21 = arith.addf %17, %20 : vector<10x1xf32>
    %22 = math.rsqrt %21 : vector<10x1xf32>
    %23 = vector.broadcast %22 : vector<10x1xf32> to vector<10x32xf32>
    %24 = arith.mulf %19, %23 : vector<10x32xf32>
    %25 = vector.broadcast %5 : vector<1x32xf32> to vector<10x32xf32>
    %26 = arith.mulf %24, %25 : vector<10x32xf32>
    %27 = vector.broadcast %6 : vector<1x32xf32> to vector<10x32xf32>
    %28 = arith.addf %26, %27 : vector<10x32xf32>
    %29 = arith.truncf %28 : vector<10x32xf32> to vector<10x32xbf16>
    %c0_10 = arith.constant 0 : index
    %c0_11 = arith.constant 0 : index
    %30 = vector.load %arg5[%c0_10, %c0_11] : memref<32x64xbf16, #tpu.memory_space<vmem>>, vector<32x64xbf16>
    %cst_12 = arith.constant dense<0.000000e+00> : vector<10x64xf32>
    %31 = tpu.matmul %29, %30, %cst_12 {dimension_numbers = #tpu.dot_dimension_numbers<[1], [0], [0], [1], [0, 0, 1, 1], [], []>} : vector<10x32xbf16>, vector<32x64xbf16>, vector<10x64xf32> -> vector<10x64xf32>
    %c0_13 = arith.constant 0 : index
    %c0_14 = arith.constant 0 : index
    %32 = vector.load %arg6[%c0_13, %c0_14] : memref<1x64xf32, #tpu.memory_space<vmem>>, vector<1x64xf32>
    %33 = vector.broadcast %32 : vector<1x64xf32> to vector<10x64xf32>
    %34 = arith.addf %31, %33 : vector<10x64xf32>
    %cst_15 = arith.constant 5.000000e-01 : f32
    %35 = vector.broadcast %cst_15 : f32 to vector<10x64xf32>
    %36 = arith.mulf %35, %34 : vector<10x64xf32>
    %cst_16 = arith.constant 0.707106769 : f32
    %37 = vector.broadcast %cst_16 : f32 to vector<10x64xf32>
    %38 = arith.mulf %34, %37 : vector<10x64xf32>
    %39 = math.erf %38 : vector<10x64xf32>
    %cst_17 = arith.constant 1.000000e+00 : f32
    %40 = vector.broadcast %cst_17 : f32 to vector<10x64xf32>
    %41 = arith.addf %40, %39 : vector<10x64xf32>
    %42 = arith.mulf %36, %41 : vector<10x64xf32>
    %c0_18 = arith.constant 0 : index
    %c0_19 = arith.constant 0 : index
    %43 = vector.load %arg10[%c0_18, %c0_19] : memref<10x32xf32, #tpu.memory_space<vmem>>, vector<10x32xf32>
    %44 = arith.truncf %42 : vector<10x64xf32> to vector<10x64xbf16>
    %c0_20 = arith.constant 0 : index
    %c0_21 = arith.constant 0 : index
    %45 = vector.load %arg7[%c0_20, %c0_21] : memref<64x32xbf16, #tpu.memory_space<vmem>>, vector<64x32xbf16>
    %cst_22 = arith.constant dense<0.000000e+00> : vector<10x32xf32>
    %46 = tpu.matmul %44, %45, %cst_22 {dimension_numbers = #tpu.dot_dimension_numbers<[1], [0], [0], [1], [0, 0, 1, 1], [], []>} : vector<10x64xbf16>, vector<64x32xbf16>, vector<10x32xf32> -> vector<10x32xf32>
    %47 = arith.addf %43, %46 : vector<10x32xf32>
    %c0_23 = arith.constant 0 : index
    %c0_24 = arith.constant 0 : index
    %48 = vector.load %arg10[%c0_23, %c0_24] : memref<10x32xf32, #tpu.memory_space<vmem>>, vector<10x32xf32>
    tpu.vector_store %arg10[%c0_23, %c0_24], %47 {strides = array<i32>} : memref<10x32xf32, #tpu.memory_space<vmem>>, vector<10x32xf32>,
    %c0_i32_25 = arith.constant 0 : i32
    %49 = arith.cmpi eq, %arg1, %c0_i32_25 : i32
    %50 = arith.extui %49 : i1 to i32
    %c0_i32_26 = arith.constant 0 : i32
    %51 = arith.cmpi ne, %50, %c0_i32_26 : i32
    scf.if %51 {
      %c0_27 = arith.constant 0 : index
      %c0_28 = arith.constant 0 : index
      %52 = vector.load %arg10[%c0_27, %c0_28] : memref<10x32xf32, #tpu.memory_space<vmem>>, vector<10x32xf32>
      %53 = arith.truncf %52 : vector<10x32xf32> to vector<10x32xbf16>
      %c0_29 = arith.constant 0 : index
      %c0_30 = arith.constant 0 : index
      %54 = vector.load %arg9[%c0_29, %c0_30] : memref<10x32xbf16, #tpu.memory_space<vmem>>, vector<10x32xbf16>
      tpu.vector_store %arg9[%c0_29, %c0_30], %53 {strides = array<i32>} : memref<10x32xbf16, #tpu.memory_space<vmem>>, vector<10x32xbf16>,
    } else {
    }
    return
  }
  func.func @transform_0(%arg0: i32, %arg1: i32) -> (i32, i32) {
    %c0_i32 = arith.constant 0 : i32
    %c0_i32_0 = arith.constant 0 : i32
    return %arg0, %c0_i32 : i32, i32
  }
  func.func @transform_1(%arg0: i32, %arg1: i32) -> (i32, i32) {
    %c0_i32 = arith.constant 0 : i32
    %c0_i32_0 = arith.constant 0 : i32
    %c0_i32_1 = arith.constant 0 : i32
    return %c0_i32, %c0_i32_0 : i32, i32
  }
  func.func @transform_2(%arg0: i32, %arg1: i32) -> (i32, i32) {
    %c0_i32 = arith.constant 0 : i32
    %c0_i32_0 = arith.constant 0 : i32
    %c0_i32_1 = arith.constant 0 : i32
    return %c0_i32, %c0_i32_0 : i32, i32
  }
  func.func @transform_3(%arg0: i32, %arg1: i32) -> (i32, i32) {
    %c0_i32 = arith.constant 0 : i32
    %c0_i32_0 = arith.constant 0 : i32
    return %c0_i32, %arg1 : i32, i32
  }
  func.func @transform_4(%arg0: i32, %arg1: i32) -> (i32, i32) {
    %c0_i32 = arith.constant 0 : i32
    %c0_i32_0 = arith.constant 0 : i32
    return %c0_i32, %arg1 : i32, i32
  }
  func.func @transform_5(%arg0: i32, %arg1: i32) -> (i32, i32) {
    %c0_i32 = arith.constant 0 : i32
    %c0_i32_0 = arith.constant 0 : i32
    return %arg1, %c0_i32 : i32, i32
  }
  func.func @transform_6(%arg0: i32, %arg1: i32) -> (i32, i32) {
    %c0_i32 = arith.constant 0 : i32
    %c0_i32_0 = arith.constant 0 : i32
    %c0_i32_1 = arith.constant 0 : i32
    return %c0_i32, %c0_i32_0 : i32, i32
  }
  func.func @transform_7(%arg0: i32, %arg1: i32) -> (i32, i32) {
    %c0_i32 = arith.constant 0 : i32
    %c0_i32_0 = arith.constant 0 : i32
    return %arg0, %c0_i32 : i32, i32
  }
}

module attributes {stable_mosaic.version = 11 : i64} {
  func.func @_ln_head_kernel(%arg0: i32, %arg1: memref<2x32xbf16, #tpu.memory_space<vmem>>, %arg2: memref<1x32xf32, #tpu.memory_space<vmem>>, %arg3: memref<1x32xf32, #tpu.memory_space<vmem>>, %arg4: memref<32x128xbf16, #tpu.memory_space<vmem>>, %arg5: memref<1x128xf32, #tpu.memory_space<vmem>>, %arg6: memref<2x128xf32, #tpu.memory_space<vmem>>) attributes {dimension_semantics = [#tpu.dimension_semantics<parallel>], iteration_bounds = array<i64: 1>, scalar_prefetch = 0 : i64, scratch_operands = 0 : i64, tpu.core_type = #tpu.core_type<tc>, window_params = [{transform_indices = @transform_0, window_bounds = array<i64: 2, 32>}, {pipeline_mode = #tpu.pipeline_mode<synchronous>, transform_indices = @transform_1, window_bounds = array<i64: 1, 32>}, {pipeline_mode = #tpu.pipeline_mode<synchronous>, transform_indices = @transform_2, window_bounds = array<i64: 1, 32>}, {pipeline_mode = #tpu.pipeline_mode<synchronous>, transform_indices = @transform_3, window_bounds = array<i64: 32, 128>}, {pipeline_mode = #tpu.pipeline_mode<synchronous>, transform_indices = @transform_4, window_bounds = array<i64: 1, 128>}, {transform_indices = @transform_5, window_bounds = array<i64: 2, 128>}]} {
    %c0 = arith.constant 0 : index
    %c0_0 = arith.constant 0 : index
    %0 = vector.load %arg1[%c0, %c0_0] : memref<2x32xbf16, #tpu.memory_space<vmem>>, vector<2x32xbf16>
    %1 = arith.extf %0 : vector<2x32xbf16> to vector<2x32xf32>
    %c0_1 = arith.constant 0 : index
    %c0_2 = arith.constant 0 : index
    %2 = vector.load %arg2[%c0_1, %c0_2] : memref<1x32xf32, #tpu.memory_space<vmem>>, vector<1x32xf32>
    %c0_3 = arith.constant 0 : index
    %c0_4 = arith.constant 0 : index
    %3 = vector.load %arg3[%c0_3, %c0_4] : memref<1x32xf32, #tpu.memory_space<vmem>>, vector<1x32xf32>
    %cst = arith.constant dense<0.000000e+00> : vector<2xf32>
    %4 = vector.multi_reduction <add>, %1, %cst [1] : vector<2x32xf32> to vector<2xf32>
    %5 = vector.shape_cast %4 : vector<2xf32> to vector<2x1xf32>
    %cst_5 = arith.constant 3.200000e+01 : f32
    %6 = vector.broadcast %cst_5 : f32 to vector<2x1xf32>
    %7 = arith.divf %5, %6 : vector<2x1xf32>
    %8 = vector.broadcast %7 : vector<2x1xf32> to vector<2x32xf32>
    %9 = arith.subf %1, %8 : vector<2x32xf32>
    %10 = arith.mulf %9, %9 : vector<2x32xf32>
    %cst_6 = arith.constant dense<0.000000e+00> : vector<2xf32>
    %11 = vector.multi_reduction <add>, %10, %cst_6 [1] : vector<2x32xf32> to vector<2xf32>
    %12 = vector.shape_cast %11 : vector<2xf32> to vector<2x1xf32>
    %cst_7 = arith.constant 3.200000e+01 : f32
    %13 = vector.broadcast %cst_7 : f32 to vector<2x1xf32>
    %14 = arith.divf %12, %13 : vector<2x1xf32>
    %15 = vector.broadcast %7 : vector<2x1xf32> to vector<2x32xf32>
    %16 = arith.subf %1, %15 : vector<2x32xf32>
    %cst_8 = arith.constant 9.99999974E-6 : f32
    %17 = vector.broadcast %cst_8 : f32 to vector<2x1xf32>
    %18 = arith.addf %14, %17 : vector<2x1xf32>
    %19 = math.rsqrt %18 : vector<2x1xf32>
    %20 = vector.broadcast %19 : vector<2x1xf32> to vector<2x32xf32>
    %21 = arith.mulf %16, %20 : vector<2x32xf32>
    %22 = vector.broadcast %2 : vector<1x32xf32> to vector<2x32xf32>
    %23 = arith.mulf %21, %22 : vector<2x32xf32>
    %24 = vector.broadcast %3 : vector<1x32xf32> to vector<2x32xf32>
    %25 = arith.addf %23, %24 : vector<2x32xf32>
    %26 = arith.truncf %25 : vector<2x32xf32> to vector<2x32xbf16>
    %c0_9 = arith.constant 0 : index
    %c0_10 = arith.constant 0 : index
    %27 = vector.load %arg4[%c0_9, %c0_10] : memref<32x128xbf16, #tpu.memory_space<vmem>>, vector<32x128xbf16>
    %cst_11 = arith.constant dense<0.000000e+00> : vector<2x128xf32>
    %28 = tpu.matmul %26, %27, %cst_11 {dimension_numbers = #tpu.dot_dimension_numbers<[1], [0], [0], [1], [0, 0, 1, 1], [], []>} : vector<2x32xbf16>, vector<32x128xbf16>, vector<2x128xf32> -> vector<2x128xf32>
    %c0_12 = arith.constant 0 : index
    %c0_13 = arith.constant 0 : index
    %29 = vector.load %arg5[%c0_12, %c0_13] : memref<1x128xf32, #tpu.memory_space<vmem>>, vector<1x128xf32>
    %30 = vector.broadcast %29 : vector<1x128xf32> to vector<2x128xf32>
    %31 = arith.addf %28, %30 : vector<2x128xf32>
    %c0_14 = arith.constant 0 : index
    %c0_15 = arith.constant 0 : index
    %32 = vector.load %arg6[%c0_14, %c0_15] : memref<2x128xf32, #tpu.memory_space<vmem>>, vector<2x128xf32>
    tpu.vector_store %arg6[%c0_14, %c0_15], %31 {strides = array<i32>} : memref<2x128xf32, #tpu.memory_space<vmem>>, vector<2x128xf32>,
    return
  }
  func.func @transform_0(%arg0: i32) -> (i32, i32) {
    %c0_i32 = arith.constant 0 : i32
    %c0_i32_0 = arith.constant 0 : i32
    return %arg0, %c0_i32 : i32, i32
  }
  func.func @transform_1(%arg0: i32) -> (i32, i32) {
    %c0_i32 = arith.constant 0 : i32
    %c0_i32_0 = arith.constant 0 : i32
    %c0_i32_1 = arith.constant 0 : i32
    return %c0_i32, %c0_i32_0 : i32, i32
  }
  func.func @transform_2(%arg0: i32) -> (i32, i32) {
    %c0_i32 = arith.constant 0 : i32
    %c0_i32_0 = arith.constant 0 : i32
    %c0_i32_1 = arith.constant 0 : i32
    return %c0_i32, %c0_i32_0 : i32, i32
  }
  func.func @transform_3(%arg0: i32) -> (i32, i32) {
    %c0_i32 = arith.constant 0 : i32
    %c0_i32_0 = arith.constant 0 : i32
    %c0_i32_1 = arith.constant 0 : i32
    return %c0_i32, %c0_i32_0 : i32, i32
  }
  func.func @transform_4(%arg0: i32) -> (i32, i32) {
    %c0_i32 = arith.constant 0 : i32
    %c0_i32_0 = arith.constant 0 : i32
    %c0_i32_1 = arith.constant 0 : i32
    return %c0_i32, %c0_i32_0 : i32, i32
  }
  func.func @transform_5(%arg0: i32) -> (i32, i32) {
    %c0_i32 = arith.constant 0 : i32
    %c0_i32_0 = arith.constant 0 : i32
    return %arg0, %c0_i32 : i32, i32
  }
}

</mosaic_0001>

<llo_original>
// kernel: vit_forward.8
$region0: #{vit_forward.8}
  #allocation0 [shape = 'u32[]', space=smem, size = 0x4, offset = 0x4, fixed_abs, tag = 'smem constant byte address 0x4 - core index']
  #allocation1 [shape = 'u32[72,128]{1,0:T(1,128)}', space=vmem, size = 0x9000, scoped, tag = 'internal scratch']
  #allocation2 [shape = 'f32[10,32]{1,0:T(8,128)}', space=vmem, size = 0x2000, scoped, tag = 'scratch operand']
  %s0 = inlined_call_operand.vmem [shape: bf16[10,32], index: 0, kind: input, shape index: {}]
  %s1 = inlined_call_operand.vmem [shape: f32[1,32], index: 1, kind: input, shape index: {}]
  %s2 = inlined_call_operand.vmem [shape: f32[1,32], index: 2, kind: input, shape index: {}]
  %s3 = inlined_call_operand.vmem [shape: bf16[32,64], index: 3, kind: input, shape index: {}]
  %s4 = inlined_call_operand.vmem [shape: f32[1,64], index: 4, kind: input, shape index: {}]
  %s5 = inlined_call_operand.vmem [shape: bf16[64,32], index: 5, kind: input, shape index: {}]
  %s6 = inlined_call_operand.vmem [shape: f32[1,32], index: 6, kind: input, shape index: {}]
  %s7 = inlined_call_operand.vmem [shape: bf16[10,32], index: 7, kind: output, shape index: {}]
  %s8 = sld [smem:[#allocation0]]
  $region46: #{vit_forward.8} parent=0
    _
  %s10 = ssub.s32 1, %s8
  %s11 = scalar_select 0, %s10, %s8
  // Predicated region
  $region2: #{vit_forward.8} parent=0 // pred_check
    _
  $region3: #{vit_forward.8} parent=0 // pred_check_branch
    %13 = sbr.rel (0) target = $region5
  $region4: #{vit_forward.8} parent=0 // pred_region
    _
  $region5: #{vit_forward.8} parent=0 // pred_fallthru
    _
  // Predicated region
  $region6: #{vit_forward.8} parent=0 // pred_check
    _
  $region7: #{vit_forward.8} parent=0 // pred_check_branch
    %15 = sbr.rel (0) target = $region9
  $region8: #{vit_forward.8} parent=0 // pred_region
    _
  $region9: #{vit_forward.8} parent=0 // pred_fallthru
    _
  // Predicated region
  $region10: #{vit_forward.8} parent=0 // pred_check
    _
  $region11: #{vit_forward.8} parent=0 // pred_check_branch
    %17 = sbr.rel (0) target = $region13
  $region12: #{vit_forward.8} parent=0 // pred_region
    _
  $region13: #{vit_forward.8} parent=0 // pred_fallthru
    _
  // Predicated region
  $region14: #{vit_forward.8} parent=0 // pred_check
    _
  $region15: #{vit_forward.8} parent=0 // pred_check_branch
    %19 = sbr.rel (0) target = $region17
  $region16: #{vit_forward.8} parent=0 // pred_region
    _
  $region17: #{vit_forward.8} parent=0 // pred_fallthru
    _
  // Predicated region
  $region18: #{vit_forward.8} parent=0 // pred_check
    _
  $region19: #{vit_forward.8} parent=0 // pred_check_branch
    %21 = sbr.rel (0) target = $region21
  $region20: #{vit_forward.8} parent=0 // pred_region
    _
  $region21: #{vit_forward.8} parent=0 // pred_fallthru
    _
  // Predicated region
  $region22: #{vit_forward.8} parent=0 // pred_check
    _
  $region23: #{vit_forward.8} parent=0 // pred_check_branch
    %23 = sbr.rel (0) target = $region25
  $region24: #{vit_forward.8} parent=0 // pred_region
    _
  $region25: #{vit_forward.8} parent=0 // pred_fallthru
    _
  // Predicated region
  $region26: #{vit_forward.8} parent=0 // pred_check
    _
  $region27: #{vit_forward.8} parent=0 // pred_check_branch
    %25 = sbr.rel (0) target = $region29
  $region28: #{vit_forward.8} parent=0 // pred_region
    _
  $region29: #{vit_forward.8} parent=0 // pred_fallthru
    _
  %v27 = vld [vmem:[%s0] sm:$0xf]
  %v28 = vld [vmem:[%s0 + $0x4] sm:$0x1]
  %v29 = vunpack.c.l.bf16 %v27
  %v30 = vunpack.c.l.bf16 %v28
  %p31 = scmp.eq.s32.totalorder 0, 0
  // Predicated region
  $region30: #{vit_forward.8} parent=0 // pred_check
    %p32 = pneg %p31
  $region31: #{vit_forward.8} parent=0 // pred_check_branch
    %34 = sbr.rel (%p32) target = $region33
  $region32: #{vit_forward.8} parent=0 // pred_region
    %v35 = vld [vmem:[%s6] sm:$0x1]
    %v37 = vperm.slane %v35, 0
    %v39 = vadd.f32 %v29, %v37
    %v40 = vadd.f32 %v30, %v37
    %vm41 = vcmask 261120
    %42 = vst.msk [vmem:[#allocation2] sm:$0xff] %vm41, %v39
    %vm43 = vcmask 254976
    %44 = vst.msk [vmem:[#allocation2 + $0x8] sm:$0x3] %vm43, %v40
  $region33: #{vit_forward.8} parent=0 // pred_fallthru
    _
  %v45 = vld [vmem:[%s1] sm:$0x1]
  %v46 = vld [vmem:[%s2] sm:$0x1]
  %vm47 = vcmask 261120
  %v48 = vsel %vm47, %v29, 0.0
  %49 = vadd.xlane.f32.xlu0 %v48
  %v50 = vpop.xlane.xlu0 %49
  %vm51 = vcmask 254976
  %v52 = vsel %vm51, %v30, 0.0
  %53 = vadd.xlane.f32.xlu0 %v52
  %v54 = vpop.xlane.xlu0 %53
  %v55 = vrcp.pop 32.0
  %v56 = vmul.f32 32.0, %v55
  %v57 = vsub.f32 1.0, %v56
  %v58 = vmul.f32 %v55, %v57
  %v59 = vadd.f32 %v55, %v58
  %vm60 = vweird.f32 %v55
  %v61 = vsel %vm60, %v55, %v59
  %v62 = vmul.f32 %v50, %v61
  %v63 = vmul.f32 %v54, %v61
  %v64 = vsub.f32 %v29, %v62
  %v65 = vsub.f32 %v30, %v63
  %v66 = vmul.f32 %v64, %v64
  %v67 = vmul.f32 %v65, %v65
  %v68 = vsel %vm47, %v66, 0.0
  %69 = vadd.xlane.f32.xlu0 %v68
  %v70 = vpop.xlane.xlu0 %69
  %v71 = vsel %vm51, %v67, 0.0
  %72 = vadd.xlane.f32.xlu0 %v71
  %v73 = vpop.xlane.xlu0 %72
  %v74 = vmul.f32 %v70, %v61
  %v75 = vmul.f32 %v73, %v61
  %v76 = vadd.f32 %v74, 1e-05
  %v77 = vadd.f32 %v75, 1e-05
  %v78 = vrsqrt.pop %v76
  %v79 = vmul.f32 %v78, %v76
  %v80 = vmul.f32 %v79, %v78
  %v81 = vmul.f32 0.5, %v80
  %v82 = vsub.f32 1.5, %v81
  %v83 = vmul.f32 %v78, %v82
  %vm84 = vweird.f32 %v76
  %vm85 = vweird.f32 %v78
  %vm86 = vmor %vm84, %vm85
  %v87 = vsel %vm86, %v78, %v83
  %v88 = vrsqrt.pop %v77
  %v89 = vmul.f32 %v88, %v77
  %v90 = vmul.f32 %v89, %v88
  %v91 = vmul.f32 0.5, %v90
  %v92 = vsub.f32 1.5, %v91
  %v93 = vmul.f32 %v88, %v92
  %vm94 = vweird.f32 %v77
  %vm95 = vweird.f32 %v88
  %vm96 = vmor %vm94, %vm95
  %v97 = vsel %vm96, %v88, %v93
  %v98 = vmul.f32 %v64, %v87
  %v99 = vmul.f32 %v65, %v97
  %v101 = vperm.slane %v45, 0
  %v103 = vmul.f32 %v98, %v101
  %v104 = vmul.f32 %v99, %v101
  %v106 = vperm.slane %v46, 0
  %v108 = vadd.f32 %v103, %v106
  %v109 = vadd.f32 %v104, %v106
  %v110 = vpack.c.bf16 %v109, %v108
  %v111 = vld [vmem:[%s3] sm:$0xf]
  %v112 = vld [vmem:[%s3 + $0x4] sm:$0xf]
  %v113 = vld [vmem:[%s3 + $0x8] sm:$0xf]
  %v114 = vld [vmem:[%s3 + $0xc] sm:$0xf]
  %v115 = vld [vmem:[%s4] sm:$0x1]
  %v117 = vperm.slane %v115, 0
  %v123 = vunpack.c.l.b16 %v111
  %v124 = vunpack.c.l.b16 %v112
  %v125 = vunpack.c.l.b16 %v113
  %v126 = vunpack.c.l.b16 %v114
  %v127 = vpack.c.b16 %v124, %v123
  %v128 = vpack.c.b16 %v126, %v125
  %v132 = vsel %vm47, %v110, 0
  %134 = vmatpush.bf16.msra.mxu0 0
  %135 = vmatpush.bf16.msra.mxu0 0
  %136 = vmatpush.bf16.msra.mxu0 0
  %137 = vmatpush.bf16.msra.mxu0 0
  %138 = vmatpush.bf16.msra.mxu0 0
  %139 = vmatpush.bf16.msra.mxu0 0
  %140 = vmatpush.bf16.msra.mxu0 %v128
  %141 = vmatpush.bf16.msra.mxu0 %v127
  %142 = vmatmul.bf16.gmra.mxu0 %v132
  %v143 = vpop.f32.mrf.mxu0
  %v144 = vadd.f32 %v117, %v143
  %v145 = vpop.f32.mrf.mxu0
  %v146 = vadd.f32 %v117, %v145
  %147 = vdwg.mxu0
  %v148 = vmul.f32 %v144, 0.5
  %v149 = vmul.f32 %v146, 0.5
  %v150 = vmul.f32 %v144, 0.70710677
  %v151 = vmul.f32 %v146, 0.70710677
  %v152 = vmul.f32 %v150, %v150
  %v153 = vmin.f32 16.0, %v152
  %v154 = vmul.f32 %v153, 2.1237322e-06
  %v155 = vadd.f32 %v154, 0.00028619796
  %v156 = vmul.f32 %v153, %v155
  %v157 = vadd.f32 %v156, 0.0036580483
  %v158 = vmul.f32 %v153, %v157
  %v159 = vadd.f32 %v158, 0.05243302
  %v160 = vmul.f32 %v153, %v159
  %v161 = vadd.f32 %v160, 0.18741608
  %v162 = vmul.f32 %v153, %v161
  %v163 = vadd.f32 %v162, 1.1283791
  %v164 = vmul.f32 %v150, %v163
  %v165 = vmul.f32 %v153, 3.8918573e-05
  %v166 = vadd.f32 %v165, 0.001143296
  %v167 = vmul.f32 %v153, %v166
  %v168 = vadd.f32 %v167, 0.014752088
  %v169 = vmul.f32 %v153, %v168
  %v170 = vadd.f32 %v169, 0.112945676
  %v171 = vmul.f32 %v153, %v170
  %v172 = vadd.f32 %v171, 0.4994258
  %v173 = vmul.f32 %v153, %v172
  %v174 = vadd.f32 %v173, 1.0
  %v175 = vrcp.pop %v174
  %v176 = vmul.f32 %v174, %v175
  %v177 = vsub.f32 1.0, %v176
  %v178 = vmul.f32 %v175, %v177
  %v179 = vadd.f32 %v175, %v178
  %vm180 = vweird.f32 %v174
  %vm181 = vweird.f32 %v175
  %vm182 = vmor %vm180, %vm181
  %v183 = vsel %vm182, %v175, %v179
  %v184 = vand.u32 2147483647, %v174
  %vm185 = vcmp.eq.f32.partialorder %v184, 8.507059e+37
  %v186 = vand.u32 %v174, 2147483648
  %v187 = vor.u32 1.1754944e-38, %v186
  %v188 = vsel %vm185, %v187, %v183
  %v189 = vmul.f32 %v164, %v188
  %v190 = vmin.f32 %v189, 1.0
  %v191 = vmax.f32 %v190, -1.0
  %v192 = vmul.f32 %v151, %v151
  %v193 = vmin.f32 16.0, %v192
  %v194 = vmul.f32 %v193, 2.1237322e-06
  %v195 = vadd.f32 %v194, 0.00028619796
  %v196 = vmul.f32 %v193, %v195
  %v197 = vadd.f32 %v196, 0.0036580483
  %v198 = vmul.f32 %v193, %v197
  %v199 = vadd.f32 %v198, 0.05243302
  %v200 = vmul.f32 %v193, %v199
  %v201 = vadd.f32 %v200, 0.18741608
  %v202 = vmul.f32 %v193, %v201
  %v203 = vadd.f32 %v202, 1.1283791
  %v204 = vmul.f32 %v151, %v203
  %v205 = vmul.f32 %v193, 3.8918573e-05
  %v206 = vadd.f32 %v205, 0.001143296
  %v207 = vmul.f32 %v193, %v206
  %v208 = vadd.f32 %v207, 0.014752088
  %v209 = vmul.f32 %v193, %v208
  %v210 = vadd.f32 %v209, 0.112945676
  %v211 = vmul.f32 %v193, %v210
  %v212 = vadd.f32 %v211, 0.4994258
  %v213 = vmul.f32 %v193, %v212
  %v214 = vadd.f32 %v213, 1.0
  %v215 = vrcp.pop %v214
  %v216 = vmul.f32 %v214, %v215
  %v217 = vsub.f32 1.0, %v216
  %v218 = vmul.f32 %v215, %v217
  %v219 = vadd.f32 %v215, %v218
  %vm220 = vweird.f32 %v214
  %vm221 = vweird.f32 %v215
  %vm222 = vmor %vm220, %vm221
  %v223 = vsel %vm222, %v215, %v219
  %v224 = vand.u32 2147483647, %v214
  %vm225 = vcmp.eq.f32.partialorder %v224, 8.507059e+37
  %v226 = vand.u32 %v214, 2147483648
  %v227 = vor.u32 1.1754944e-38, %v226
  %v228 = vsel %vm225, %v227, %v223
  %v229 = vmul.f32 %v204, %v228
  %v230 = vmin.f32 %v229, 1.0
  %v231 = vmax.f32 %v230, -1.0
  %v232 = vadd.f32 %v191, 1.0
  %v233 = vadd.f32 %v231, 1.0
  %v234 = vmul.f32 %v148, %v232
  %v235 = vmul.f32 %v149, %v233
  %v236 = vld [vmem:[#allocation2] sm:$0xff]
  %v237 = vld [vmem:[#allocation2 + $0x8] sm:$0x3]
  %v238 = vpack.c.bf16 %v235, %v234
  %v239 = vld [vmem:[%s5] sm:$0xf]
  %v240 = vld [vmem:[%s5 + $0x4] sm:$0xf]
  %v241 = vld [vmem:[%s5 + $0x8] sm:$0xf]
  %v242 = vld [vmem:[%s5 + $0xc] sm:$0xf]
  %v243 = vld [vmem:[%s5 + $0x10] sm:$0xf]
  %v244 = vld [vmem:[%s5 + $0x14] sm:$0xf]
  %v245 = vld [vmem:[%s5 + $0x18] sm:$0xf]
  %v246 = vld [vmem:[%s5 + $0x1c] sm:$0xf]
  %v255 = vunpack.c.l.b16 %v239
  %v256 = vunpack.c.l.b16 %v240
  %v257 = vunpack.c.l.b16 %v241
  %v258 = vunpack.c.l.b16 %v242
  %v259 = vunpack.c.l.b16 %v243
  %v260 = vunpack.c.l.b16 %v244
  %v261 = vunpack.c.l.b16 %v245
  %v262 = vunpack.c.l.b16 %v246
  %v263 = vpack.c.b16 %v256, %v255
  %v264 = vpack.c.b16 %v258, %v257
  %v265 = vpack.c.b16 %v260, %v259
  %v266 = vpack.c.b16 %v262, %v261
  %vm271 = vcmask 523264
  %v273 = vsel %vm271, %v238, 0
  %275 = vmatpush.bf16.msra.mxu0 0
  %276 = vmatpush.bf16.msra.mxu0 0
  %277 = vmatpush.bf16.msra.mxu0 0
  %278 = vmatpush.bf16.msra.mxu0 0
  %279 = vmatpush.bf16.msra.mxu0 %v266
  %280 = vmatpush.bf16.msra.mxu0 %v265
  %281 = vmatpush.bf16.msra.mxu0 %v264
  %282 = vmatpush.bf16.msra.mxu0 %v263
  %283 = vmatmul.bf16.gmra.mxu0 %v273
  %v284 = vpop.f32.mrf.mxu0
  %v285 = vadd.f32 0.0, %v284
  %v286 = vpop.f32.mrf.mxu0
  %v287 = vadd.f32 0.0, %v286
  %288 = vdwg.mxu0
  %v289 = vadd.f32 %v236, %v285
  %v290 = vadd.f32 %v237, %v287
  %291 = vst.msk [vmem:[#allocation2] sm:$0xff] %vm47, %v289
  %292 = vst.msk [vmem:[#allocation2 + $0x8] sm:$0x3] %vm51, %v290
  // Predicated region
  $region34: #{vit_forward.8} parent=0 // pred_check
    %p293 = pneg %p31
  $region35: #{vit_forward.8} parent=0 // pred_check_branch
    %295 = sbr.rel (%p293) target = $region37
  $region36: #{vit_forward.8} parent=0 // pred_region
    %v296 = vld [vmem:[#allocation2] sm:$0xff]
    %v297 = vld [vmem:[#allocation2 + $0x8] sm:$0x3]
    %v298 = vpack.c.bf16 %v296, %v296
    %v299 = vpack.c.bf16 %v297, %v297
    %vm300 = vcmask 257024
    %301 = vst.msk [vmem:[%s7] sm:$0xf] %vm300, %v298
    %vm302 = vcmask 253952
    %303 = vst.msk [vmem:[%s7 + $0x4] sm:$0x1] %vm302, %v299
  $region37: #{vit_forward.8} parent=0 // pred_fallthru
    _
  // Predicated region
  $region38: #{vit_forward.8} parent=0 // pred_check
    _
  $region39: #{vit_forward.8} parent=0 // pred_check_branch
    %305 = sbr.rel (0) target = $region41
  $region40: #{vit_forward.8} parent=0 // pred_region
    _
  $region41: #{vit_forward.8} parent=0 // pred_fallthru
    _
  // Predicated region
  $region42: #{vit_forward.8} parent=0 // pred_check
    _
  $region43: #{vit_forward.8} parent=0 // pred_check_branch
    %307 = sbr.rel (0) target = $region45
  $region44: #{vit_forward.8} parent=0 // pred_region
    _
  $region45: #{vit_forward.8} parent=0 // pred_fallthru
    _

// kernel: vit_forward.11
$region0: #{vit_forward.11}
  #allocation0 [shape = 'u32[]', space=smem, size = 0x4, offset = 0x4, fixed_abs, tag = 'smem constant byte address 0x4 - core index']
  #allocation1 [shape = 'u32[72,128]{1,0:T(1,128)}', space=vmem, size = 0x9000, scoped, tag = 'internal scratch']
  %s0 = inlined_call_operand.vmem [shape: bf16[2,32], index: 0, kind: input, shape index: {}]
  %s1 = inlined_call_operand.vmem [shape: f32[1,32], index: 1, kind: input, shape index: {}]
  %s2 = inlined_call_operand.vmem [shape: f32[1,32], index: 2, kind: input, shape index: {}]
  %s3 = inlined_call_operand.vmem [shape: bf16[32,128], index: 3, kind: input, shape index: {}]
  %s4 = inlined_call_operand.vmem [shape: f32[1,128], index: 4, kind: input, shape index: {}]
  %s5 = inlined_call_operand.hbm [shape: f32[2,128], index: 5, kind: output, shape index: {}]
  %s6 = sld [smem:[#allocation0]]
  $region30: #{vit_forward.11} parent=0
    _
  %s8 = ssub.s32 1, %s6
  %s9 = scalar_select 0, %s8, %s6
  $region1: #{vit_forward.11} parent=0
    #allocation2 [shape = 'u8[1024]{0}', space=vmem, size = 0x400, scoped, tag = 'output window, operand 0, single buffered']
    #allocation3 [shape = 's32[1]{0}', space=sflag, size = 0x4, scoped, tag = 'scoped memory for vit_forward.11']
    %10 = vsyncpa [#allocation3], 0
    // Predicated region
    $region2: #{vit_forward.11} parent=1 // pred_check
      _
    $region3: #{vit_forward.11} parent=1 // pred_check_branch
      %12 = sbr.rel (0) target = $region5
    $region4: #{vit_forward.11} parent=1 // pred_region
      _
    $region5: #{vit_forward.11} parent=1 // pred_fallthru
      _
    // Predicated region
    $region6: #{vit_forward.11} parent=1 // pred_check
      _
    $region7: #{vit_forward.11} parent=1 // pred_check_branch
      %14 = sbr.rel (0) target = $region9
    $region8: #{vit_forward.11} parent=1 // pred_region
      _
    $region9: #{vit_forward.11} parent=1 // pred_fallthru
      _
    // Predicated region
    $region10: #{vit_forward.11} parent=1 // pred_check
      _
    $region11: #{vit_forward.11} parent=1 // pred_check_branch
      %16 = sbr.rel (0) target = $region13
    $region12: #{vit_forward.11} parent=1 // pred_region
      _
    $region13: #{vit_forward.11} parent=1 // pred_fallthru
      _
    // Predicated region
    $region14: #{vit_forward.11} parent=1 // pred_check
      _
    $region15: #{vit_forward.11} parent=1 // pred_check_branch
      %18 = sbr.rel (0) target = $region17
    $region16: #{vit_forward.11} parent=1 // pred_region
      _
    $region17: #{vit_forward.11} parent=1 // pred_fallthru
      _
    // Predicated region
    $region18: #{vit_forward.11} parent=1 // pred_check
      _
    $region19: #{vit_forward.11} parent=1 // pred_check_branch
      %20 = sbr.rel (0) target = $region21
    $region20: #{vit_forward.11} parent=1 // pred_region
      _
    $region21: #{vit_forward.11} parent=1 // pred_fallthru
      _
    %v22 = vld [vmem:[%s0] sm:$0x1]
    %v23 = vunpack.c.l.bf16 %v22
    %v24 = vld [vmem:[%s1] sm:$0x1]
    %v25 = vld [vmem:[%s2] sm:$0x1]
    %vm26 = vcmask 254976
    %v27 = vsel %vm26, %v23, 0.0
    %28 = vadd.xlane.f32.xlu0 %v27
    %v29 = vpop.xlane.xlu0 %28
    %v30 = vrcp.pop 32.0
    %v31 = vmul.f32 32.0, %v30
    %v32 = vsub.f32 1.0, %v31
    %v33 = vmul.f32 %v30, %v32
    %v34 = vadd.f32 %v30, %v33
    %vm35 = vweird.f32 %v30
    %v36 = vsel %vm35, %v30, %v34
    %v37 = vmul.f32 %v29, %v36
    %v38 = vsub.f32 %v23, %v37
    %v39 = vmul.f32 %v38, %v38
    %v40 = vsel %vm26, %v39, 0.0
    %41 = vadd.xlane.f32.xlu0 %v40
    %v42 = vpop.xlane.xlu0 %41
    %v43 = vmul.f32 %v42, %v36
    %v44 = vadd.f32 %v43, 1e-05
    %v45 = vrsqrt.pop %v44
    %v46 = vmul.f32 %v45, %v44
    %v47 = vmul.f32 %v46, %v45
    %v48 = vmul.f32 0.5, %v47
    %v49 = vsub.f32 1.5, %v48
    %v50 = vmul.f32 %v45, %v49
    %vm51 = vweird.f32 %v44
    %vm52 = vweird.f32 %v45
    %vm53 = vmor %vm51, %vm52
    %v54 = vsel %vm53, %v45, %v50
    %v55 = vmul.f32 %v38, %v54
    %v57 = vperm.slane %v24, 0
    %v59 = vmul.f32 %v55, %v57
    %v61 = vperm.slane %v25, 0
    %v63 = vadd.f32 %v59, %v61
    %v64 = vpack.c.bf16 %v63, %v63
    %v65 = vld [vmem:[%s3] sm:$0xf]
    %v66 = vld [vmem:[%s3 + $0x4] sm:$0xf]
    %v67 = vld [vmem:[%s3 + $0x8] sm:$0xf]
    %v68 = vld [vmem:[%s3 + $0xc] sm:$0xf]
    %v69 = vld [vmem:[%s4] sm:$0x1]
    %v71 = vperm.slane %v69, 0
    %v77 = vunpack.c.l.b16 %v65
    %v78 = vunpack.c.l.b16 %v66
    %v79 = vunpack.c.l.b16 %v67
    %v80 = vunpack.c.l.b16 %v68
    %v81 = vpack.c.b16 %v78, %v77
    %v82 = vpack.c.b16 %v80, %v79
    %vm85 = vcmask 261120
    %v87 = vsel %vm85, %v64, 0
    %89 = vmatpush.bf16.msra.mxu0 0
    %90 = vmatpush.bf16.msra.mxu0 0
    %91 = vmatpush.bf16.msra.mxu0 0
    %92 = vmatpush.bf16.msra.mxu0 0
    %93 = vmatpush.bf16.msra.mxu0 0
    %94 = vmatpush.bf16.msra.mxu0 0
    %95 = vmatpush.bf16.msra.mxu0 %v82
    %96 = vmatpush.bf16.msra.mxu0 %v81
    %97 = vmatmul.bf16.gmra.mxu0 %v87
    %v98 = vpop.f32.mrf.mxu0
    %v99 = vadd.f32 %v71, %v98
    %v100 = vpop.f32.mrf.mxu0
    %101 = vdwg.mxu0
    %102 = vst [vmem:[#allocation2] sm:$0x3] %v99
    // Predicated region
    $region22: #{vit_forward.11} parent=1 // pred_check
      _
    $region23: #{vit_forward.11} parent=1 // pred_check_branch
      %104 = sbr.rel (0) target = $region25
    $region24: #{vit_forward.11} parent=1 // pred_region
      %106 = vsyncadd [#allocation3], 0
      %s108 = sshll.u32 [#allocation2], 4
      %s109 = int_to_ptr.vmem [resolvable:$true] %s108
      %s110 = sshll.u32 %s5, 4
      %s111 = int_to_ptr.hbm [resolvable:$true] %s110
      %113 = dma.vmem_to_hbm [thread:$0]  %s109, 32, %s111, [#allocation3]
    $region25: #{vit_forward.11} parent=1 // pred_fallthru
      _
    // Predicated region
    $region26: #{vit_forward.11} parent=1 // pred_check
      _
    $region27: #{vit_forward.11} parent=1 // pred_check_branch
      %115 = sbr.rel (0) target = $region29
    $region28: #{vit_forward.11} parent=1 // pred_region
      %117 = dma.done [#allocation3], 32
    $region29: #{vit_forward.11} parent=1 // pred_fallthru
      _
    %118 = vsyncpa [#allocation3], 1

// kernel: vit_forward.6
$region0: #{vit_forward.6}
  #allocation0 [shape = 'u32[]', space=smem, size = 0x4, offset = 0x4, fixed_abs, tag = 'smem constant byte address 0x4 - core index']
  #allocation1 [shape = 'u32[72,128]{1,0:T(1,128)}', space=vmem, size = 0x9000, scoped, tag = 'internal scratch']
  %s0 = inlined_call_operand.vmem [shape: f32[8,192], index: 0, kind: input, shape index: {}]
  %s1 = inlined_call_operand.vmem [shape: f32[1,192], index: 1, kind: input, shape index: {}]
  %s2 = inlined_call_operand.vmem [shape: f32[1,192], index: 2, kind: input, shape index: {}]
  %s3 = inlined_call_operand.vmem [shape: bf16[192,32], index: 3, kind: input, shape index: {}]
  %s4 = inlined_call_operand.vmem [shape: f32[1,32], index: 4, kind: input, shape index: {}]
  %s5 = inlined_call_operand.vmem [shape: f32[1,32], index: 5, kind: input, shape index: {}]
  %s6 = inlined_call_operand.vmem [shape: f32[1,32], index: 6, kind: input, shape index: {}]
  %s7 = inlined_call_operand.vmem [shape: bf16[8,32], index: 7, kind: output, shape index: {}]
  %s8 = sld [smem:[#allocation0]]
  $region38: #{vit_forward.6} parent=0
    _
  %s10 = ssub.s32 1, %s8
  %s11 = scalar_select 0, %s10, %s8
  // Predicated region
  $region2: #{vit_forward.6} parent=0 // pred_check
    _
  $region3: #{vit_forward.6} parent=0 // pred_check_branch
    %13 = sbr.rel (0) target = $region5
  $region4: #{vit_forward.6} parent=0 // pred_region
    _
  $region5: #{vit_forward.6} parent=0 // pred_fallthru
    _
  // Predicated region
  $region6: #{vit_forward.6} parent=0 // pred_check
    _
  $region7: #{vit_forward.6} parent=0 // pred_check_branch
    %15 = sbr.rel (0) target = $region9
  $region8: #{vit_forward.6} parent=0 // pred_region
    _
  $region9: #{vit_forward.6} parent=0 // pred_fallthru
    _
  // Predicated region
  $region10: #{vit_forward.6} parent=0 // pred_check
    _
  $region11: #{vit_forward.6} parent=0 // pred_check_branch
    %17 = sbr.rel (0) target = $region13
  $region12: #{vit_forward.6} parent=0 // pred_region
    _
  $region13: #{vit_forward.6} parent=0 // pred_fallthru
    _
  // Predicated region
  $region14: #{vit_forward.6} parent=0 // pred_check
    _
  $region15: #{vit_forward.6} parent=0 // pred_check_branch
    %19 = sbr.rel (0) target = $region17
  $region16: #{vit_forward.6} parent=0 // pred_region
    _
  $region17: #{vit_forward.6} parent=0 // pred_fallthru
    _
  // Predicated region
  $region18: #{vit_forward.6} parent=0 // pred_check
    _
  $region19: #{vit_forward.6} parent=0 // pred_check_branch
    %21 = sbr.rel (0) target = $region21
  $region20: #{vit_forward.6} parent=0 // pred_region
    _
  $region21: #{vit_forward.6} parent=0 // pred_fallthru
    _
  // Predicated region
  $region22: #{vit_forward.6} parent=0 // pred_check
    _
  $region23: #{vit_forward.6} parent=0 // pred_check_branch
    %23 = sbr.rel (0) target = $region25
  $region24: #{vit_forward.6} parent=0 // pred_region
    _
  $region25: #{vit_forward.6} parent=0 // pred_fallthru
    _
  // Predicated region
  $region26: #{vit_forward.6} parent=0 // pred_check
    _
  $region27: #{vit_forward.6} parent=0 // pred_check_branch
    %25 = sbr.rel (0) target = $region29
  $region28: #{vit_forward.6} parent=0 // pred_region
    _
  $region29: #{vit_forward.6} parent=0 // pred_fallthru
    _
  %v27 = vld [vmem:[%s0] sm:$0xff]
  %v28 = vld [vmem:[%s0 + $0x8] sm:$0xff]
  %v29 = vld [vmem:[%s1] sm:$0x3]
  %v30 = vld [vmem:[%s2] sm:$0x3]
  %vm31 = vcmask 523264
  %v32 = vsel %vm31, %v28, 0.0
  %v33 = vadd.f32 %v27, %v32
  %34 = vadd.xlane.f32.xlu0 %v33
  %v35 = vpop.xlane.xlu0 %34
  %v36 = vrcp.pop 192.0
  %v37 = vmul.f32 192.0, %v36
  %v38 = vsub.f32 1.0, %v37
  %v39 = vmul.f32 %v36, %v38
  %v40 = vadd.f32 %v36, %v39
  %vm41 = vweird.f32 %v36
  %v42 = vsel %vm41, %v36, %v40
  %v43 = vmul.f32 %v35, %v42
  %v44 = vsub.f32 %v27, %v43
  %v45 = vsub.f32 %v28, %v43
  %v46 = vmul.f32 %v44, %v44
  %v47 = vmul.f32 %v45, %v45
  %v48 = vsel %vm31, %v47, 0.0
  %v49 = vadd.f32 %v46, %v48
  %50 = vadd.xlane.f32.xlu0 %v49
  %v51 = vpop.xlane.xlu0 %50
  %v52 = vmul.f32 %v51, %v42
  %v53 = vadd.f32 %v52, 1e-05
  %v54 = vrsqrt.pop %v53
  %v55 = vmul.f32 %v54, %v53
  %v56 = vmul.f32 %v55, %v54
  %v57 = vmul.f32 0.5, %v56
  %v58 = vsub.f32 1.5, %v57
  %v59 = vmul.f32 %v54, %v58
  %vm60 = vweird.f32 %v53
  %vm61 = vweird.f32 %v54
  %vm62 = vmor %vm60, %vm61
  %v63 = vsel %vm62, %v54, %v59
  %v64 = vmul.f32 %v44, %v63
  %v65 = vmul.f32 %v45, %v63
  %v67 = vperm.slane %v29, 0
  %v68 = vperm.slane %v29, 1
  %v71 = vmul.f32 %v64, %v67
  %v72 = vmul.f32 %v65, %v68
  %v74 = vperm.slane %v30, 0
  %v75 = vperm.slane %v30, 1
  %v78 = vadd.f32 %v71, %v74
  %v79 = vadd.f32 %v72, %v75
  %v80 = vpack.c.bf16 %v78, %v78
  %v81 = vpack.c.bf16 %v79, %v79
  %v82 = vld [vmem:[%s3] sm:$0xf]
  %v83 = vld [vmem:[%s3 + $0x4] sm:$0xf]
  %v84 = vld [vmem:[%s3 + $0x8] sm:$0xf]
  %v85 = vld [vmem:[%s3 + $0xc] sm:$0xf]
  %v86 = vld [vmem:[%s3 + $0x10] sm:$0xf]
  %v87 = vld [vmem:[%s3 + $0x14] sm:$0xf]
  %v88 = vld [vmem:[%s3 + $0x18] sm:$0xf]
  %v89 = vld [vmem:[%s3 + $0x1c] sm:$0xf]
  %v90 = vld [vmem:[%s3 + $0x20] sm:$0xf]
  %v91 = vld [vmem:[%s3 + $0x24] sm:$0xf]
  %v92 = vld [vmem:[%s3 + $0x28] sm:$0xf]
  %v93 = vld [vmem:[%s3 + $0x2c] sm:$0xf]
  %v94 = vld [vmem:[%s3 + $0x30] sm:$0xf]
  %v95 = vld [vmem:[%s3 + $0x34] sm:$0xf]
  %v96 = vld [vmem:[%s3 + $0x38] sm:$0xf]
  %v97 = vld [vmem:[%s3 + $0x3c] sm:$0xf]
  %v98 = vld [vmem:[%s3 + $0x40] sm:$0xf]
  %v99 = vld [vmem:[%s3 + $0x44] sm:$0xf]
  %v100 = vld [vmem:[%s3 + $0x48] sm:$0xf]
  %v101 = vld [vmem:[%s3 + $0x4c] sm:$0xf]
  %v102 = vld [vmem:[%s3 + $0x50] sm:$0xf]
  %v103 = vld [vmem:[%s3 + $0x54] sm:$0xf]
  %v104 = vld [vmem:[%s3 + $0x58] sm:$0xf]
  %v105 = vld [vmem:[%s3 + $0x5c] sm:$0xf]
  %v106 = vld [vmem:[%s4] sm:$0x1]
  %v108 = vperm.slane %v106, 0
  %v134 = vunpack.c.l.b16 %v82
  %v135 = vunpack.c.l.b16 %v83
  %v136 = vunpack.c.l.b16 %v84
  %v137 = vunpack.c.l.b16 %v85
  %v138 = vunpack.c.l.b16 %v86
  %v139 = vunpack.c.l.b16 %v87
  %v140 = vunpack.c.l.b16 %v88
  %v141 = vunpack.c.l.b16 %v89
  %v142 = vunpack.c.l.b16 %v90
  %v143 = vunpack.c.l.b16 %v91
  %v144 = vunpack.c.l.b16 %v92
  %v145 = vunpack.c.l.b16 %v93
  %v146 = vunpack.c.l.b16 %v94
  %v147 = vunpack.c.l.b16 %v95
  %v148 = vunpack.c.l.b16 %v96
  %v149 = vunpack.c.l.b16 %v97
  %v150 = vunpack.c.l.b16 %v98
  %v151 = vunpack.c.l.b16 %v99
  %v152 = vunpack.c.l.b16 %v100
  %v153 = vunpack.c.l.b16 %v101
  %v154 = vunpack.c.l.b16 %v102
  %v155 = vunpack.c.l.b16 %v103
  %v156 = vunpack.c.l.b16 %v104
  %v157 = vunpack.c.l.b16 %v105
  %v158 = vpack.c.b16 %v135, %v134
  %v159 = vpack.c.b16 %v137, %v136
  %v160 = vpack.c.b16 %v139, %v138
  %v161 = vpack.c.b16 %v141, %v140
  %v162 = vpack.c.b16 %v143, %v142
  %v163 = vpack.c.b16 %v145, %v144
  %v164 = vpack.c.b16 %v147, %v146
  %v165 = vpack.c.b16 %v149, %v148
  %v166 = vpack.c.b16 %v151, %v150
  %v167 = vpack.c.b16 %v153, %v152
  %v168 = vpack.c.b16 %v155, %v154
  %v169 = vpack.c.b16 %v157, %v156
  %v183 = vsel %vm31, %v81, 0
  %185 = vmatpush.bf16.msra.mxu0 %v165
  %186 = vmatpush.bf16.msra.mxu0 %v164
  %187 = vmatpush.bf16.msra.mxu0 %v163
  %188 = vmatpush.bf16.msra.mxu0 %v162
  %189 = vmatpush.bf16.msra.mxu0 %v161
  %190 = vmatpush.bf16.msra.mxu0 %v160
  %191 = vmatpush.bf16.msra.mxu0 %v159
  %192 = vmatpush.bf16.msra.mxu0 %v158
  %193 = vmatmul.bf16.gmra.mxu0 %v80
  %v194 = vpop.f32.mrf.mxu0
  %v195 = vadd.f32 %v108, %v194
  %v196 = vpop.f32.mrf.mxu0
  %197 = vdwg.mxu0
  %198 = vmatpush.bf16.msra.mxu0 0
  %199 = vmatpush.bf16.msra.mxu0 0
  %200 = vmatpush.bf16.msra.mxu0 0
  %201 = vmatpush.bf16.msra.mxu0 0
  %202 = vmatpush.bf16.msra.mxu0 %v169
  %203 = vmatpush.bf16.msra.mxu0 %v168
  %204 = vmatpush.bf16.msra.mxu0 %v167
  %205 = vmatpush.bf16.msra.mxu0 %v166
  %206 = vmatmul.bf16.gmra.mxu0 %v183
  %v207 = vpop.f32.mrf.mxu0
  %v208 = vadd.f32 %v195, %v207
  %v209 = vpop.f32.mrf.mxu0
  %210 = vdwg.mxu0
  %v211 = vld [vmem:[%s5] sm:$0x1]
  %v212 = vld [vmem:[%s6] sm:$0x1]
  %vm213 = vcmask 261120
  %v214 = vsel %vm213, %v208, 0.0
  %215 = vadd.xlane.f32.xlu0 %v214
  %v216 = vpop.xlane.xlu0 %215
  %v217 = vrcp.pop 32.0
  %v218 = vmul.f32 32.0, %v217
  %v219 = vsub.f32 1.0, %v218
  %v220 = vmul.f32 %v217, %v219
  %v221 = vadd.f32 %v217, %v220
  %vm222 = vweird.f32 %v217
  %v223 = vsel %vm222, %v217, %v221
  %v224 = vmul.f32 %v216, %v223
  %v225 = vsub.f32 %v208, %v224
  %v226 = vmul.f32 %v225, %v225
  %v227 = vsel %vm213, %v226, 0.0
  %228 = vadd.xlane.f32.xlu0 %v227
  %v229 = vpop.xlane.xlu0 %228
  %v230 = vmul.f32 %v229, %v223
  %v231 = vadd.f32 %v230, 1e-05
  %v232 = vrsqrt.pop %v231
  %v233 = vmul.f32 %v232, %v231
  %v234 = vmul.f32 %v233, %v232
  %v235 = vmul.f32 0.5, %v234
  %v236 = vsub.f32 1.5, %v235
  %v237 = vmul.f32 %v232, %v236
  %vm238 = vweird.f32 %v231
  %vm239 = vweird.f32 %v232
  %vm240 = vmor %vm238, %vm239
  %v241 = vsel %vm240, %v232, %v237
  %v242 = vmul.f32 %v225, %v241
  %v244 = vperm.slane %v211, 0
  %v246 = vmul.f32 %v242, %v244
  %v248 = vperm.slane %v212, 0
  %v250 = vadd.f32 %v246, %v248
  %v251 = vpack.c.bf16 %v250, %v250
  %vm252 = vcmask 257024
  %253 = vst.msk [vmem:[%s7] sm:$0xf] %vm252, %v251
  // Predicated region
  $region30: #{vit_forward.6} parent=0 // pred_check
    _
  $region31: #{vit_forward.6} parent=0 // pred_check_branch
    %255 = sbr.rel (0) target = $region33
  $region32: #{vit_forward.6} parent=0 // pred_region
    _
  $region33: #{vit_forward.6} parent=0 // pred_fallthru
    _
  // Predicated region
  $region34: #{vit_forward.6} parent=0 // pred_check
    _
  $region35: #{vit_forward.6} parent=0 // pred_check_branch
    %257 = sbr.rel (0) target = $region37
  $region36: #{vit_forward.6} parent=0 // pred_region
    _
  $region37: #{vit_forward.6} parent=0 // pred_fallthru
    _

// kernel: vit_forward.7
$region0: #{vit_forward.7}
  #allocation0 [shape = 'u32[]', space=smem, size = 0x4, offset = 0x4, fixed_abs, tag = 'smem constant byte address 0x4 - core index']
  #allocation1 [shape = 'u32[72,128]{1,0:T(1,128)}', space=vmem, size = 0x9000, scoped, tag = 'internal scratch']
  #allocation2 [shape = 'f32[5,32]{1,0:T(8,128)}', space=vmem, size = 0x1000, scoped, tag = 'scratch operand']
  %s0 = inlined_call_operand.vmem [shape: bf16[2,5,32], index: 0, kind: input, shape index: {}]
  %s1 = inlined_call_operand.vmem [shape: f32[1,32], index: 1, kind: input, shape index: {}]
  %s2 = inlined_call_operand.vmem [shape: f32[1,32], index: 2, kind: input, shape index: {}]
  %s3 = inlined_call_operand.vmem [shape: bf16[32,32], index: 3, kind: input, shape index: {}]
  %s4 = inlined_call_operand.vmem [shape: bf16[32,32], index: 4, kind: input, shape index: {}]
  %s5 = inlined_call_operand.vmem [shape: bf16[32,32], index: 5, kind: input, shape index: {}]
  %s6 = inlined_call_operand.vmem [shape: bf16[32,32], index: 6, kind: input, shape index: {}]
  %s7 = inlined_call_operand.vmem [shape: f32[1,32], index: 7, kind: input, shape index: {}]
  %s8 = inlined_call_operand.vmem [shape: bf16[2,5,32], index: 8, kind: output, shape index: {}]
  %s9 = sld [smem:[#allocation0]]
  $region73: #{vit_forward.7} parent=0
    _
  %s11 = ssub.s32 1, %s9
  %s12 = scalar_select 0, %s11, %s9
  loop: start=0, step=1, limit=4
  $region2: #{vit_forward.7} parent=0 // loop_pre_header
    _
  $region3: #{vit_forward.7} parent=0 // loop_header
    %s14 = sphi 0, %s18
    %p15 = scmp.ge.s32.totalorder %s14, 4
    %s21 = sphi 0, %s33
    %s22 = sphi 0, %s29
    %s23 = sphi 0, %s21
    %s24 = sphi 0, %s22
    %s25 = sphi 0, %s23
    %s26 = sphi 0, %s24
    %s36 = sphi 0, %s38
    %s39 = sphi 0, %s36
    %s40 = sphi 0, %s39
    %s56 = sphi 0, %s40
    %s60 = sphi 0, %s60
    %s62 = sphi 0, %s60
    %s63 = sphi 0, %s62
    %s77 = sphi 0, %s63
    %s81 = sphi 0, %s81
    %s83 = sphi 0, %s81
    %s84 = sphi 0, %s83
    %s98 = sphi 0, %s84
    %s104 = sphi 0, %s106
    %s107 = sphi 0, %s104
    %s108 = sphi 0, %s107
    %s124 = sphi 0, %s108
    %s130 = sphi 0, %s132
    %s133 = sphi 0, %s130
    %s134 = sphi 0, %s133
    %s150 = sphi 0, %s134
    %s156 = sphi 0, %s158
    %s159 = sphi 0, %s156
    %s160 = sphi 0, %s159
    %s176 = sphi 0, %s160
    %s182 = sphi 0, %s184
    %s185 = sphi 0, %s182
    %s186 = sphi 0, %s185
    %s202 = sphi 0, %s186
    %s206 = sphi 0, %s206
    %s208 = sphi 0, %s206
    %s209 = sphi 0, %s208
    %s223 = sphi 0, %s209
    %s229 = sphi 0, %s231
    %s232 = sphi 0, %s229
    %s233 = sphi 0, %s232
    %s249 = sphi 0, %s233
  $region4: #{vit_forward.7} parent=0 // loop_header_branch
    %17 = sbr.rel (%p15) target = $region8
  $region5: #{vit_forward.7} parent=0 // loop_body
    %s19 = ssub.s32 %s14, 1
    %s20 = ssub.s32 %s14, 2
    %s27 = sadd.s32 1, %s22
    %p28 = scmp.ge.s32.totalorder %s27, 1
    %s29 = scalar_select %p28, 0, %s27
    %s30 = sadd.s32 1, %s21
    %s31 = scalar_select %p28, %s30, %s21
    %p32 = scmp.ge.s32.totalorder %s31, 2
    %s33 = scalar_select %p32, 0, %s31
    %s34 = ssub.s32 %s21, %s33
    %p35 = scmp.eq.s32.totalorder %s34, 0
    %s37 = sadd.s32 %s36, 1
    %s38 = scalar_select %p35, %s36, %s37
    %p41 = pneg %p35
    %p42 = scmp.eq.s32.totalorder %s14, 1
    %p43 = por %p41, %p42
    %p44 = scmp.ne.s32.totalorder %s36, %s39
    %p45 = scmp.eq.s32.totalorder %s14, 0
    %p46 = por %p44, %p45
    %p47 = scmp.ne.s32.totalorder %s36, %s39
    %p48 = scmp.eq.s32.totalorder %s19, 1
    %p49 = por %p47, %p48
    %p50 = scmp.ne.s32.totalorder %s39, %s40
    %p51 = scmp.eq.s32.totalorder %s19, 0
    %p52 = por %p50, %p51
    %p53 = scmp.ne.s32.totalorder %s39, %s40
    %p54 = scmp.eq.s32.totalorder %s20, 1
    %p55 = por %p53, %p54
    %p57 = scmp.ne.s32.totalorder %s40, %s56
    %p58 = scmp.eq.s32.totalorder %s20, 0
    %p59 = por %p57, %p58
    %s61 = sadd.s32 %s60, 1
    %p64 = scmp.eq.s32.totalorder %s14, 1
    %p65 = scmp.ne.s32.totalorder %s60, %s62
    %p66 = scmp.eq.s32.totalorder %s14, 0
    %p67 = por %p65, %p66
    %p68 = scmp.ne.s32.totalorder %s60, %s62
    %p69 = scmp.eq.s32.totalorder %s19, 1
    %p70 = por %p68, %p69
    %p71 = scmp.ne.s32.totalorder %s62, %s63
    %p72 = scmp.eq.s32.totalorder %s19, 0
    %p73 = por %p71, %p72
    %p74 = scmp.ne.s32.totalorder %s62, %s63
    %p75 = scmp.eq.s32.totalorder %s20, 1
    %p76 = por %p74, %p75
    %p78 = scmp.ne.s32.totalorder %s63, %s77
    %p79 = scmp.eq.s32.totalorder %s20, 0
    %p80 = por %p78, %p79
    %s82 = sadd.s32 %s81, 1
    %p85 = scmp.eq.s32.totalorder %s14, 1
    %p86 = scmp.ne.s32.totalorder %s81, %s83
    %p87 = scmp.eq.s32.totalorder %s14, 0
    %p88 = por %p86, %p87
    %p89 = scmp.ne.s32.totalorder %s81, %s83
    %p90 = scmp.eq.s32.totalorder %s19, 1
    %p91 = por %p89, %p90
    %p92 = scmp.ne.s32.totalorder %s83, %s84
    %p93 = scmp.eq.s32.totalorder %s19, 0
    %p94 = por %p92, %p93
    %p95 = scmp.ne.s32.totalorder %s83, %s84
    %p96 = scmp.eq.s32.totalorder %s20, 1
    %p97 = por %p95, %p96
    %p99 = scmp.ne.s32.totalorder %s84, %s98
    %p100 = scmp.eq.s32.totalorder %s20, 0
    %p101 = por %p99, %p100
    %s102 = ssub.s32 %s22, %s29
    %p103 = scmp.eq.s32.totalorder %s102, 0
    %s105 = sadd.s32 %s104, 1
    %s106 = scalar_select %p103, %s104, %s105
    %p109 = pneg %p103
    %p110 = scmp.eq.s32.totalorder %s14, 1
    %p111 = por %p109, %p110
    %p112 = scmp.ne.s32.totalorder %s104, %s107
    %p113 = scmp.eq.s32.totalorder %s14, 0
    %p114 = por %p112, %p113
    %p115 = scmp.ne.s32.totalorder %s104, %s107
    %p116 = scmp.eq.s32.totalorder %s19, 1
    %p117 = por %p115, %p116
    %p118 = scmp.ne.s32.totalorder %s107, %s108
    %p119 = scmp.eq.s32.totalorder %s19, 0
    %p120 = por %p118, %p119
    %p121 = scmp.ne.s32.totalorder %s107, %s108
    %p122 = scmp.eq.s32.totalorder %s20, 1
    %p123 = por %p121, %p122
    %p125 = scmp.ne.s32.totalorder %s108, %s124
    %p126 = scmp.eq.s32.totalorder %s20, 0
    %p127 = por %p125, %p126
    %s128 = ssub.s32 %s22, %s29
    %p129 = scmp.eq.s32.totalorder %s128, 0
    %s131 = sadd.s32 %s130, 1
    %s132 = scalar_select %p129, %s130, %s131
    %p135 = pneg %p129
    %p136 = scmp.eq.s32.totalorder %s14, 1
    %p137 = por %p135, %p136
    %p138 = scmp.ne.s32.totalorder %s130, %s133
    %p139 = scmp.eq.s32.totalorder %s14, 0
    %p140 = por %p138, %p139
    %p141 = scmp.ne.s32.totalorder %s130, %s133
    %p142 = scmp.eq.s32.totalorder %s19, 1
    %p143 = por %p141, %p142
    %p144 = scmp.ne.s32.totalorder %s133, %s134
    %p145 = scmp.eq.s32.totalorder %s19, 0
    %p146 = por %p144, %p145
    %p147 = scmp.ne.s32.totalorder %s133, %s134
    %p148 = scmp.eq.s32.totalorder %s20, 1
    %p149 = por %p147, %p148
    %p151 = scmp.ne.s32.totalorder %s134, %s150
    %p152 = scmp.eq.s32.totalorder %s20, 0
    %p153 = por %p151, %p152
    %s154 = ssub.s32 %s22, %s29
    %p155 = scmp.eq.s32.totalorder %s154, 0
    %s157 = sadd.s32 %s156, 1
    %s158 = scalar_select %p155, %s156, %s157
    %p161 = pneg %p155
    %p162 = scmp.eq.s32.totalorder %s14, 1
    %p163 = por %p161, %p162
    %p164 = scmp.ne.s32.totalorder %s156, %s159
    %p165 = scmp.eq.s32.totalorder %s14, 0
    %p166 = por %p164, %p165
    %p167 = scmp.ne.s32.totalorder %s156, %s159
    %p168 = scmp.eq.s32.totalorder %s19, 1
    %p169 = por %p167, %p168
    %p170 = scmp.ne.s32.totalorder %s159, %s160
    %p171 = scmp.eq.s32.totalorder %s19, 0
    %p172 = por %p170, %p171
    %p173 = scmp.ne.s32.totalorder %s159, %s160
    %p174 = scmp.eq.s32.totalorder %s20, 1
    %p175 = por %p173, %p174
    %p177 = scmp.ne.s32.totalorder %s160, %s176
    %p178 = scmp.eq.s32.totalorder %s20, 0
    %p179 = por %p177, %p178
    %s180 = ssub.s32 %s22, %s29
    %p181 = scmp.eq.s32.totalorder %s180, 0
    %s183 = sadd.s32 %s182, 1
    %s184 = scalar_select %p181, %s182, %s183
    %p187 = pneg %p181
    %p188 = scmp.eq.s32.totalorder %s14, 1
    %p189 = por %p187, %p188
    %p190 = scmp.ne.s32.totalorder %s182, %s185
    %p191 = scmp.eq.s32.totalorder %s14, 0
    %p192 = por %p190, %p191
    %p193 = scmp.ne.s32.totalorder %s182, %s185
    %p194 = scmp.eq.s32.totalorder %s19, 1
    %p195 = por %p193, %p194
    %p196 = scmp.ne.s32.totalorder %s185, %s186
    %p197 = scmp.eq.s32.totalorder %s19, 0
    %p198 = por %p196, %p197
    %p199 = scmp.ne.s32.totalorder %s185, %s186
    %p200 = scmp.eq.s32.totalorder %s20, 1
    %p201 = por %p199, %p200
    %p203 = scmp.ne.s32.totalorder %s186, %s202
    %p204 = scmp.eq.s32.totalorder %s20, 0
    %p205 = por %p203, %p204
    %s207 = sadd.s32 %s206, 1
    %p210 = scmp.eq.s32.totalorder %s14, 1
    %p211 = scmp.ne.s32.totalorder %s206, %s208
    %p212 = scmp.eq.s32.totalorder %s14, 0
    %p213 = por %p211, %p212
    %p214 = scmp.ne.s32.totalorder %s206, %s208
    %p215 = scmp.eq.s32.totalorder %s19, 1
    %p216 = por %p214, %p215
    %p217 = scmp.ne.s32.totalorder %s208, %s209
    %p218 = scmp.eq.s32.totalorder %s19, 0
    %p219 = por %p217, %p218
    %p220 = scmp.ne.s32.totalorder %s208, %s209
    %p221 = scmp.eq.s32.totalorder %s20, 1
    %p222 = por %p220, %p221
    %p224 = scmp.ne.s32.totalorder %s209, %s223
    %p225 = scmp.eq.s32.totalorder %s20, 0
    %p226 = por %p224, %p225
    %s227 = ssub.s32 %s21, %s33
    %p228 = scmp.eq.s32.totalorder %s227, 0
    %s230 = sadd.s32 %s229, 1
    %s231 = scalar_select %p228, %s229, %s230
    %p234 = pneg %p228
    %p235 = scmp.eq.s32.totalorder %s14, 1
    %p236 = por %p234, %p235
    %p237 = scmp.ne.s32.totalorder %s229, %s232
    %p238 = scmp.eq.s32.totalorder %s14, 0
    %p239 = por %p237, %p238
    %p240 = scmp.ne.s32.totalorder %s229, %s232
    %p241 = scmp.eq.s32.totalorder %s19, 1
    %p242 = por %p240, %p241
    %p243 = scmp.ne.s32.totalorder %s232, %s233
    %p244 = scmp.eq.s32.totalorder %s19, 0
    %p245 = por %p243, %p244
    %p246 = scmp.ne.s32.totalorder %s232, %s233
    %p247 = scmp.eq.s32.totalorder %s20, 1
    %p248 = por %p246, %p247
    %p250 = scmp.ne.s32.totalorder %s233, %s249
    %p251 = scmp.eq.s32.totalorder %s20, 0
    %p252 = por %p250, %p251
    %p253 = scmp.le.s32.totalorder 1, %s14
    %p254 = scmp.lt.s32.totalorder %s14, 3
    %p255 = pnand %p253, %p254
    %p256 = pneg %p255
    // Predicated region
    $region9: #{vit_forward.7} parent=5 // pred_check
      _
    $region10: #{vit_forward.7} parent=5 // pred_check_branch
      %258 = sbr.rel (%p255) target = $region12
    $region11: #{vit_forward.7} parent=5 // pred_region
      %s259 = ssub.s32 %s14, 1
      // Predicated region
      $region13: #{vit_forward.7} parent=11 // pred_check
        %p260 = pneg %p73
      $region14: #{vit_forward.7} parent=11 // pred_check_branch
        %262 = sbr.rel (%p260) target = $region16
      $region15: #{vit_forward.7} parent=11 // pred_region
        _
      $region16: #{vit_forward.7} parent=11 // pred_fallthru
        _
      // Predicated region
      $region17: #{vit_forward.7} parent=11 // pred_check
        %p263 = pneg %p94
      $region18: #{vit_forward.7} parent=11 // pred_check_branch
        %265 = sbr.rel (%p263) target = $region20
      $region19: #{vit_forward.7} parent=11 // pred_region
        _
      $region20: #{vit_forward.7} parent=11 // pred_fallthru
        _
      // Predicated region
      $region21: #{vit_forward.7} parent=11 // pred_check
        %p266 = pneg %p120
      $region22: #{vit_forward.7} parent=11 // pred_check_branch
        %268 = sbr.rel (%p266) target = $region24
      $region23: #{vit_forward.7} parent=11 // pred_region
        %p269 = scmp.lt.s32.totalorder %s24, 0
        %s270 = scalar_select %p269, %s24, 0
        %s271 = smul.addr %s270, 4
        %s272 = scalar_lea.vmem %s3, %s271
      $region24: #{vit_forward.7} parent=11 // pred_fallthru
        _
      // Predicated region
      $region25: #{vit_forward.7} parent=11 // pred_check
        %p273 = pneg %p146
      $region26: #{vit_forward.7} parent=11 // pred_check_branch
        %275 = sbr.rel (%p273) target = $region28
      $region27: #{vit_forward.7} parent=11 // pred_region
        %p276 = scmp.lt.s32.totalorder %s24, 0
        %s277 = scalar_select %p276, %s24, 0
        %s278 = smul.addr %s277, 4
        %s279 = scalar_lea.vmem %s4, %s278
      $region28: #{vit_forward.7} parent=11 // pred_fallthru
        _
      // Predicated region
      $region29: #{vit_forward.7} parent=11 // pred_check
        %p280 = pneg %p172
      $region30: #{vit_forward.7} parent=11 // pred_check_branch
        %282 = sbr.rel (%p280) target = $region32
      $region31: #{vit_forward.7} parent=11 // pred_region
        %p283 = scmp.lt.s32.totalorder %s24, 0
        %s284 = scalar_select %p283, %s24, 0
        %s285 = smul.addr %s284, 4
        %s286 = scalar_lea.vmem %s5, %s285
      $region32: #{vit_forward.7} parent=11 // pred_fallthru
        _
      // Predicated region
      $region33: #{vit_forward.7} parent=11 // pred_check
        %p287 = pneg %p198
      $region34: #{vit_forward.7} parent=11 // pred_check_branch
        %289 = sbr.rel (%p287) target = $region36
      $region35: #{vit_forward.7} parent=11 // pred_region
        %s290 = smul.u32 4, %s24
        %p291 = scmp.lt.s32.totalorder %s290, 3
        %s292 = scalar_select %p291, %s290, 3
        %s293 = smul.addr %s292, 4
        %s294 = scalar_lea.vmem %s6, %s293
        %s295 = smul.u32 4, %s24
      $region36: #{vit_forward.7} parent=11 // pred_fallthru
        _
      // Predicated region
      $region37: #{vit_forward.7} parent=11 // pred_check
        %p296 = pneg %p219
      $region38: #{vit_forward.7} parent=11 // pred_check_branch
        %298 = sbr.rel (%p296) target = $region40
      $region39: #{vit_forward.7} parent=11 // pred_region
        _
      $region40: #{vit_forward.7} parent=11 // pred_fallthru
        _
    $region12: #{vit_forward.7} parent=5 // pred_fallthru
      _
    %p299 = scmp.lt.s32.totalorder %s14, 2
    // Predicated region
    $region41: #{vit_forward.7} parent=5 // pred_check
      %p300 = pneg %p299
    $region42: #{vit_forward.7} parent=5 // pred_check_branch
      %302 = sbr.rel (%p300) target = $region44
    $region43: #{vit_forward.7} parent=5 // pred_region
      // Predicated region
      $region45: #{vit_forward.7} parent=43 // pred_check
        %p303 = pneg %p46
      $region46: #{vit_forward.7} parent=43 // pred_check_branch
        %305 = sbr.rel (%p303) target = $region48
      $region47: #{vit_forward.7} parent=43 // pred_region
        %p306 = scmp.lt.s32.totalorder %s21, 1
        %s307 = scalar_select %p306, %s21, 1
        %s308 = smul.addr %s307, 4
        %s309 = scalar_lea.vmem %s0, %s308
      $region48: #{vit_forward.7} parent=43 // pred_fallthru
        _
    $region44: #{vit_forward.7} parent=5 // pred_fallthru
      _
    %p310 = scmp.le.s32.totalorder 1, %s14
    %p311 = scmp.lt.s32.totalorder %s14, 3
    %p312 = pnand %p310, %p311
    %p313 = pneg %p312
    // Predicated region
    $region49: #{vit_forward.7} parent=5 // pred_check
      _
    $region50: #{vit_forward.7} parent=5 // pred_check_branch
      %315 = sbr.rel (%p312) target = $region52
    $region51: #{vit_forward.7} parent=5 // pred_region
      %s316 = ssub.s32 %s14, 1
      %p317 = scmp.lt.s32.totalorder %s23, 1
      %s318 = scalar_select %p317, %s23, 1
      %s319 = smul.addr %s318, 4
      %s320 = scalar_lea.vmem %s0, %s319
      %p321 = pneg %p52
      %p322 = pneg %p49
      %p323 = pneg %p73
      %p324 = pneg %p70
      %p325 = pneg %p94
      %p326 = pneg %p91
      %p327 = scmp.lt.s32.totalorder %s24, 0
      %s328 = scalar_select %p327, %s24, 0
      %s329 = smul.addr %s328, 4
      %s330 = scalar_lea.vmem %s3, %s329
      %p331 = pneg %p120
      %p332 = pneg %p117
      %p333 = scmp.lt.s32.totalorder %s24, 0
      %s334 = scalar_select %p333, %s24, 0
      %s335 = smul.addr %s334, 4
      %s336 = scalar_lea.vmem %s4, %s335
      %p337 = pneg %p146
      %p338 = pneg %p143
      %p339 = scmp.lt.s32.totalorder %s24, 0
      %s340 = scalar_select %p339, %s24, 0
      %s341 = smul.addr %s340, 4
      %s342 = scalar_lea.vmem %s5, %s341
      %p343 = pneg %p172
      %p344 = pneg %p169
      %s345 = smul.u32 4, %s24
      %p346 = scmp.lt.s32.totalorder %s345, 3
      %s347 = scalar_select %p346, %s345, 3
      %s348 = smul.addr %s347, 4
      %s349 = scalar_lea.vmem %s6, %s348
      %p350 = pneg %p198
      %p351 = pneg %p195
      %p352 = pneg %p219
      %p353 = pneg %p216
      %p354 = pneg %p245
      %p355 = pneg %p242
      %p356 = scmp.lt.s32.totalorder %s23, 1
      %s357 = scalar_select %p356, %s23, 1
      %s358 = smul.addr %s357, 4
      %s359 = scalar_lea.vmem %s8, %s358
      %p360 = scmp.lt.s32.totalorder %s23, 1
      %s361 = scalar_select %p360, %s23, 1
      %s362 = smul.addr %s361, 4
      %s363 = scalar_lea.vmem %s0, %s362
      %p364 = scmp.lt.s32.totalorder %s24, 0
      %s365 = scalar_select %p364, %s24, 0
      %s366 = smul.addr %s365, 4
      %s367 = scalar_lea.vmem %s3, %s366
      %p368 = scmp.lt.s32.totalorder %s24, 0
      %s369 = scalar_select %p368, %s24, 0
      %s370 = smul.addr %s369, 4
      %s371 = scalar_lea.vmem %s4, %s370
      %p372 = scmp.lt.s32.totalorder %s24, 0
      %s373 = scalar_select %p372, %s24, 0
      %s374 = smul.addr %s373, 4
      %s375 = scalar_lea.vmem %s5, %s374
      %s376 = smul.u32 4, %s24
      %p377 = scmp.lt.s32.totalorder %s376, 3
      %s378 = scalar_select %p377, %s376, 3
      %s379 = smul.addr %s378, 4
      %s380 = scalar_lea.vmem %s6, %s379
      %s381 = smul.u32 4, %s24
      %p382 = scmp.lt.s32.totalorder %s23, 1
      %s383 = scalar_select %p382, %s23, 1
      %s384 = smul.addr %s383, 4
      %s385 = scalar_lea.vmem %s8, %s384
      %v387 = vld [vmem:[%s363] sm:$0x7]
      %v388 = vunpack.c.l.bf16 %v387
      %p389 = scmp.eq.s32.totalorder %s24, 0
      // Predicated region
      $region53: #{vit_forward.7} parent=51 // pred_check
        %p390 = pneg %p389
      $region54: #{vit_forward.7} parent=51 // pred_check_branch
        %392 = sbr.rel (%p390) target = $region56
      $region55: #{vit_forward.7} parent=51 // pred_region
        %v393 = vld [vmem:[%s7] sm:$0x1]
        %v395 = vperm.slane %v393, 0
        %v397 = vadd.f32 %v388, %v395
        %vm398 = vcmask 258048
        %399 = vst.msk [vmem:[#allocation2] sm:$0x1f] %vm398, %v397
      $region56: #{vit_forward.7} parent=51 // pred_fallthru
        _
      %v400 = vld [vmem:[%s1] sm:$0x1]
      %v401 = vld [vmem:[%s2] sm:$0x1]
      %vm402 = vcmask 258048
      %v403 = vsel %vm402, %v388, 0.0
      %404 = vadd.xlane.f32.xlu0 %v403
      %v405 = vpop.xlane.xlu0 %404
      %v406 = vrcp.pop 32.0
      %v407 = vmul.f32 32.0, %v406
      %v408 = vsub.f32 1.0, %v407
      %v409 = vmul.f32 %v406, %v408
      %v410 = vadd.f32 %v406, %v409
      %vm411 = vweird.f32 %v406
      %v412 = vsel %vm411, %v406, %v410
      %v413 = vmul.f32 %v405, %v412
      %v414 = vsub.f32 %v388, %v413
      %v415 = vmul.f32 %v414, %v414
      %v416 = vsel %vm402, %v415, 0.0
      %417 = vadd.xlane.f32.xlu0 %v416
      %v418 = vpop.xlane.xlu0 %417
      %v419 = vmul.f32 %v418, %v412
      %v420 = vadd.f32 %v419, 1e-05
      %v421 = vrsqrt.pop %v420
      %v422 = vmul.f32 %v421, %v420
      %v423 = vmul.f32 %v422, %v421
      %v424 = vmul.f32 0.5, %v423
      %v425 = vsub.f32 1.5, %v424
      %v426 = vmul.f32 %v421, %v425
      %vm427 = vweird.f32 %v420
      %vm428 = vweird.f32 %v421
      %vm429 = vmor %vm427, %vm428
      %v430 = vsel %vm429, %v421, %v426
      %v431 = vmul.f32 %v414, %v430
      %v433 = vperm.slane %v400, 0
      %v435 = vmul.f32 %v431, %v433
      %v437 = vperm.slane %v401, 0
      %v439 = vadd.f32 %v435, %v437
      %v440 = vpack.c.bf16 %v439, %v439
      %v441 = vld [vmem:[%s367] sm:$0xf]
      %v442 = vld [vmem:[%s367 + $0x4] sm:$0xf]
      %v443 = vld [vmem:[%s367 + $0x8] sm:$0xf]
      %v444 = vld [vmem:[%s367 + $0xc] sm:$0xf]
      %v449 = vunpack.c.l.b16 %v441
      %v450 = vunpack.c.l.b16 %v442
      %v451 = vunpack.c.l.b16 %v443
      %v452 = vunpack.c.l.b16 %v444
      %v453 = vpack.c.b16 %v450, %v449
      %v454 = vpack.c.b16 %v452, %v451
      %vm457 = vcmask 261120
      %v459 = vsel %vm457, %v440, 0
      %461 = vmatpush.bf16.msra.mxu0 0
      %462 = vmatpush.bf16.msra.mxu0 0
      %463 = vmatpush.bf16.msra.mxu0 0
      %464 = vmatpush.bf16.msra.mxu0 0
      %465 = vmatpush.bf16.msra.mxu0 0
      %466 = vmatpush.bf16.msra.mxu0 0
      %467 = vmatpush.bf16.msra.mxu0 %v454
      %468 = vmatpush.bf16.msra.mxu0 %v453
      %469 = vmatmul.bf16.gmra.mxu0 %v459
      %v470 = vpop.f32.mrf.mxu0
      %v471 = vadd.f32 0.0, %v470
      %v472 = vpop.f32.mrf.mxu0
      %473 = vdwg.mxu0
      %v474 = vld [vmem:[%s371] sm:$0xf]
      %v475 = vld [vmem:[%s371 + $0x4] sm:$0xf]
      %v476 = vld [vmem:[%s371 + $0x8] sm:$0xf]
      %v477 = vld [vmem:[%s371 + $0xc] sm:$0xf]
      %v482 = vunpack.c.l.b16 %v474
      %v483 = vunpack.c.l.b16 %v475
      %v484 = vunpack.c.l.b16 %v476
      %v485 = vunpack.c.l.b16 %v477
      %v486 = vpack.c.b16 %v483, %v482
      %v487 = vpack.c.b16 %v485, %v484
      %490 = vmatpush.bf16.msra.mxu0 0
      %491 = vmatpush.bf16.msra.mxu0 0
      %492 = vmatpush.bf16.msra.mxu0 0
      %493 = vmatpush.bf16.msra.mxu0 0
      %494 = vmatpush.bf16.msra.mxu0 0
      %495 = vmatpush.bf16.msra.mxu0 0
      %496 = vmatpush.bf16.msra.mxu0 %v487
      %497 = vmatpush.bf16.msra.mxu0 %v486
      %498 = vmatmul.bf16.gmra.mxu0 %v459
      %v499 = vpop.f32.mrf.mxu0
      %v500 = vadd.f32 0.0, %v499
      %v501 = vpop.f32.mrf.mxu0
      %502 = vdwg.mxu0
      %v503 = vld [vmem:[%s375] sm:$0xf]
      %v504 = vld [vmem:[%s375 + $0x4] sm:$0xf]
      %v505 = vld [vmem:[%s375 + $0x8] sm:$0xf]
      %v506 = vld [vmem:[%s375 + $0xc] sm:$0xf]
      %v511 = vunpack.c.l.b16 %v503
      %v512 = vunpack.c.l.b16 %v504
      %v513 = vunpack.c.l.b16 %v505
      %v514 = vunpack.c.l.b16 %v506
      %v515 = vpack.c.b16 %v512, %v511
      %v516 = vpack.c.b16 %v514, %v513
      %519 = vmatpush.bf16.msra.mxu0 0
      %520 = vmatpush.bf16.msra.mxu0 0
      %521 = vmatpush.bf16.msra.mxu0 0
      %522 = vmatpush.bf16.msra.mxu0 0
      %523 = vmatpush.bf16.msra.mxu0 0
      %524 = vmatpush.bf16.msra.mxu0 0
      %525 = vmatpush.bf16.msra.mxu0 %v516
      %526 = vmatpush.bf16.msra.mxu0 %v515
      %527 = vmatmul.bf16.gmra.mxu0 %v459
      %v528 = vpop.f32.mrf.mxu0
      %v529 = vadd.f32 0.0, %v528
      %v530 = vpop.f32.mrf.mxu0
      %531 = vdwg.mxu0
      %533 = vrot.lane.b32.xlu0 %v471, 120
      %v534 = vpop.permute.xlu0 %533
      %536 = vrot.lane.b32.xlu0 %v471, 112
      %v537 = vpop.permute.xlu0 %536
      %539 = vrot.lane.b32.xlu0 %v471, 104
      %v540 = vpop.permute.xlu0 %539
      %v542 = vrot.slane %v537, 4
      %vm543 = vcmask 1047556
      %v544 = vsel %vm543, %v542, %v471
      %v545 = vrot.slane %v471, 4
      %v546 = vsel %vm543, %v537, %v545
      %v548 = vunpack.c.l.s4 1983009808
      %v549 = vunpack.c.0.s8 %v548
      %v550 = vperm.slane %v544, %v549
      %v552 = vunpack.c.l.s4 1983009808
      %v553 = vunpack.c.0.s8 %v552
      %v554 = vperm.slane %v546, %v553
      %v555 = vrot.slane %v540, 4
      %v556 = vsel %vm543, %v555, %v534
      %v557 = vrot.slane %v534, 4
      %v558 = vsel %vm543, %v540, %v557
      %v560 = vunpack.c.l.s4 1983009808
      %v561 = vunpack.c.0.s8 %v560
      %v562 = vperm.slane %v556, %v561
      %v564 = vunpack.c.l.s4 1983009808
      %v565 = vunpack.c.0.s8 %v564
      %v566 = vperm.slane %v558, %v565
      %v567 = vrot.slane %v562, 4
      %v568 = vsel %vm543, %v567, %v550
      %v569 = vrot.slane %v550, 4
      %v570 = vsel %vm543, %v562, %v569
      %v572 = vunpack.c.l.s4 1934713408
      %v573 = vunpack.c.0.s8 %v572
      %v574 = vperm.slane %v568, %v573
      %v576 = vunpack.c.l.s4 1934713408
      %v577 = vunpack.c.0.s8 %v576
      %v578 = vperm.slane %v570, %v577
      %v579 = vrot.slane %v566, 4
      %v580 = vsel %vm543, %v579, %v554
      %v581 = vrot.slane %v574, 4
      %v582 = vsel %vm543, 0.0, %v581
      %v583 = vrot.slane %v578, 4
      %v584 = vsel %vm543, 0.0, %v583
      %v585 = vsel %vm543, %v583, %v574
      %v587 = vunpack.c.l.s4 1983009808
      %v588 = vunpack.c.0.s8 %v587
      %v589 = vperm.slane %v585, %v588
      %v590 = vrot.slane %v584, 4
      %v591 = vsel %vm543, %v590, %v582
      %v593 = vunpack.c.l.s4 1983009808
      %v594 = vunpack.c.0.s8 %v593
      %v595 = vperm.slane %v591, %v594
      %v597 = vunpack.c.l.s4 1934713408
      %v598 = vunpack.c.0.s8 %v597
      %v599 = vperm.slane %v580, %v598
      %v601 = vunpack.c.l.s4 1983009808
      %v602 = vunpack.c.0.s8 %v601
      %v603 = vperm.slane %v599, %v602
      %v604 = vrot.slane %v595, 4
      %v605 = vsel %vm543, %v604, %v589
      %v606 = vrot.slane %v589, 4
      %v607 = vsel %vm543, %v595, %v606
      %v609 = vunpack.c.l.s4 1934713408
      %v610 = vunpack.c.0.s8 %v609
      %v611 = vperm.slane %v605, %v610
      %v613 = vunpack.c.l.s4 1934713408
      %v614 = vunpack.c.0.s8 %v613
      %v615 = vperm.slane %v607, %v614
      %v616 = vrot.slane %v603, 4
      %v617 = vsel %vm543, 0.0, %v616
      %v619 = vunpack.c.l.s4 1934713408
      %v620 = vunpack.c.0.s8 %v619
      %v621 = vperm.slane %v603, %v620
      %v623 = vunpack.c.l.s4 1934713408
      %v624 = vunpack.c.0.s8 %v623
      %v625 = vperm.slane %v617, %v624
      %v626 = vrot.slane %v621, 4
      %v627 = vsel %vm543, %v626, %v611
      %v628 = vrot.slane %v611, 4
      %v629 = vsel %vm543, %v621, %v628
      %v630 = vrot.slane %v625, 4
      %v631 = vsel %vm543, %v630, %v615
      %v632 = vrot.slane %v615, 4
      %v633 = vsel %vm543, %v625, %v632
      %635 = vrot.lane.b32.xlu0 %v500, 120
      %v636 = vpop.permute.xlu0 %635
      %638 = vrot.lane.b32.xlu0 %v500, 112
      %v639 = vpop.permute.xlu0 %638
      %641 = vrot.lane.b32.xlu0 %v500, 104
      %v642 = vpop.permute.xlu0 %641
      %v644 = vrot.slane %v639, 4
      %v645 = vsel %vm543, %v644, %v500
      %v646 = vrot.slane %v500, 4
      %v647 = vsel %vm543, %v639, %v646
      %v649 = vunpack.c.l.s4 1983009808
      %v650 = vunpack.c.0.s8 %v649
      %v651 = vperm.slane %v645, %v650
      %v653 = vunpack.c.l.s4 1983009808
      %v654 = vunpack.c.0.s8 %v653
      %v655 = vperm.slane %v647, %v654
      %v656 = vrot.slane %v642, 4
      %v657 = vsel %vm543, %v656, %v636
      %v658 = vrot.slane %v636, 4
      %v659 = vsel %vm543, %v642, %v658
      %v661 = vunpack.c.l.s4 1983009808
      %v662 = vunpack.c.0.s8 %v661
      %v663 = vperm.slane %v657, %v662
      %v665 = vunpack.c.l.s4 1983009808
      %v666 = vunpack.c.0.s8 %v665
      %v667 = vperm.slane %v659, %v666
      %v668 = vrot.slane %v663, 4
      %v669 = vsel %vm543, %v668, %v651
      %v670 = vrot.slane %v651, 4
      %v671 = vsel %vm543, %v663, %v670
      %v673 = vunpack.c.l.s4 1934713408
      %v674 = vunpack.c.0.s8 %v673
      %v675 = vperm.slane %v669, %v674
      %v677 = vunpack.c.l.s4 1934713408
      %v678 = vunpack.c.0.s8 %v677
      %v679 = vperm.slane %v671, %v678
      %v680 = vrot.slane %v667, 4
      %v681 = vsel %vm543, %v680, %v655
      %v682 = vrot.slane %v675, 4
      %v683 = vsel %vm543, 0.0, %v682
      %v684 = vrot.slane %v679, 4
      %v685 = vsel %vm543, 0.0, %v684
      %v686 = vsel %vm543, %v684, %v675
      %v688 = vunpack.c.l.s4 1983009808
      %v689 = vunpack.c.0.s8 %v688
      %v690 = vperm.slane %v686, %v689
      %v691 = vrot.slane %v685, 4
      %v692 = vsel %vm543, %v691, %v683
      %v694 = vunpack.c.l.s4 1983009808
      %v695 = vunpack.c.0.s8 %v694
      %v696 = vperm.slane %v692, %v695
      %v698 = vunpack.c.l.s4 1934713408
      %v699 = vunpack.c.0.s8 %v698
      %v700 = vperm.slane %v681, %v699
      %v702 = vunpack.c.l.s4 1983009808
      %v703 = vunpack.c.0.s8 %v702
      %v704 = vperm.slane %v700, %v703
      %v705 = vrot.slane %v696, 4
      %v706 = vsel %vm543, %v705, %v690
      %v707 = vrot.slane %v690, 4
      %v708 = vsel %vm543, %v696, %v707
      %v710 = vunpack.c.l.s4 1934713408
      %v711 = vunpack.c.0.s8 %v710
      %v712 = vperm.slane %v706, %v711
      %v714 = vunpack.c.l.s4 1934713408
      %v715 = vunpack.c.0.s8 %v714
      %v716 = vperm.slane %v708, %v715
      %v717 = vrot.slane %v704, 4
      %v718 = vsel %vm543, 0.0, %v717
      %v720 = vunpack.c.l.s4 1934713408
      %v721 = vunpack.c.0.s8 %v720
      %v722 = vperm.slane %v704, %v721
      %v724 = vunpack.c.l.s4 1934713408
      %v725 = vunpack.c.0.s8 %v724
      %v726 = vperm.slane %v718, %v725
      %v727 = vrot.slane %v722, 4
      %v728 = vsel %vm543, %v727, %v712
      %v729 = vrot.slane %v712, 4
      %v730 = vsel %vm543, %v722, %v729
      %v731 = vrot.slane %v726, 4
      %v732 = vsel %vm543, %v731, %v716
      %v733 = vrot.slane %v716, 4
      %v734 = vsel %vm543, %v726, %v733
      %736 = vrot.lane.b32.xlu0 %v529, 120
      %v737 = vpop.permute.xlu0 %736
      %739 = vrot.lane.b32.xlu0 %v529, 112
      %v740 = vpop.permute.xlu0 %739
      %742 = vrot.lane.b32.xlu0 %v529, 104
      %v743 = vpop.permute.xlu0 %742
      %v745 = vrot.slane %v740, 4
      %v746 = vsel %vm543, %v745, %v529
      %v747 = vrot.slane %v529, 4
      %v748 = vsel %vm543, %v740, %v747
      %v750 = vunpack.c.l.s4 1983009808
      %v751 = vunpack.c.0.s8 %v750
      %v752 = vperm.slane %v746, %v751
      %v754 = vunpack.c.l.s4 1983009808
      %v755 = vunpack.c.0.s8 %v754
      %v756 = vperm.slane %v748, %v755
      %v757 = vrot.slane %v743, 4
      %v758 = vsel %vm543, %v757, %v737
      %v759 = vrot.slane %v737, 4
      %v760 = vsel %vm543, %v743, %v759
      %v762 = vunpack.c.l.s4 1983009808
      %v763 = vunpack.c.0.s8 %v762
      %v764 = vperm.slane %v758, %v763
      %v766 = vunpack.c.l.s4 1983009808
      %v767 = vunpack.c.0.s8 %v766
      %v768 = vperm.slane %v760, %v767
      %v769 = vrot.slane %v764, 4
      %v770 = vsel %vm543, %v769, %v752
      %v771 = vrot.slane %v752, 4
      %v772 = vsel %vm543, %v764, %v771
      %v774 = vunpack.c.l.s4 1934713408
      %v775 = vunpack.c.0.s8 %v774
      %v776 = vperm.slane %v770, %v775
      %v778 = vunpack.c.l.s4 1934713408
      %v779 = vunpack.c.0.s8 %v778
      %v780 = vperm.slane %v772, %v779
      %v781 = vrot.slane %v768, 4
      %v782 = vsel %vm543, %v781, %v756
      %v783 = vrot.slane %v776, 4
      %v784 = vsel %vm543, 0.0, %v783
      %v785 = vrot.slane %v780, 4
      %v786 = vsel %vm543, 0.0, %v785
      %v787 = vsel %vm543, %v785, %v776
      %v789 = vunpack.c.l.s4 1983009808
      %v790 = vunpack.c.0.s8 %v789
      %v791 = vperm.slane %v787, %v790
      %v792 = vrot.slane %v786, 4
      %v793 = vsel %vm543, %v792, %v784
      %v795 = vunpack.c.l.s4 1983009808
      %v796 = vunpack.c.0.s8 %v795
      %v797 = vperm.slane %v793, %v796
      %v799 = vunpack.c.l.s4 1934713408
      %v800 = vunpack.c.0.s8 %v799
      %v801 = vperm.slane %v782, %v800
      %v803 = vunpack.c.l.s4 1983009808
      %v804 = vunpack.c.0.s8 %v803
      %v805 = vperm.slane %v801, %v804
      %v806 = vrot.slane %v797, 4
      %v807 = vsel %vm543, %v806, %v791
      %v808 = vrot.slane %v791, 4
      %v809 = vsel %vm543, %v797, %v808
      %v811 = vunpack.c.l.s4 1934713408
      %v812 = vunpack.c.0.s8 %v811
      %v813 = vperm.slane %v807, %v812
      %v815 = vunpack.c.l.s4 1934713408
      %v816 = vunpack.c.0.s8 %v815
      %v817 = vperm.slane %v809, %v816
      %v818 = vrot.slane %v805, 4
      %v819 = vsel %vm543, 0.0, %v818
      %v821 = vunpack.c.l.s4 1934713408
      %v822 = vunpack.c.0.s8 %v821
      %v823 = vperm.slane %v805, %v822
      %v825 = vunpack.c.l.s4 1934713408
      %v826 = vunpack.c.0.s8 %v825
      %v827 = vperm.slane %v819, %v826
      %v828 = vrot.slane %v823, 4
      %v829 = vsel %vm543, %v828, %v813
      %v830 = vrot.slane %v813, 4
      %v831 = vsel %vm543, %v823, %v830
      %v832 = vrot.slane %v827, 4
      %v833 = vsel %vm543, %v832, %v817
      %v834 = vrot.slane %v817, 4
      %v835 = vsel %vm543, %v827, %v834
      %v836 = vpack.c.bf16 %v627, %v627
      %v837 = vpack.c.bf16 %v629, %v629
      %v838 = vpack.c.bf16 %v631, %v631
      %v839 = vpack.c.bf16 %v633, %v633
      %v840 = vpack.c.bf16 %v728, %v728
      %v841 = vpack.c.bf16 %v730, %v730
      %v842 = vpack.c.bf16 %v732, %v732
      %v843 = vpack.c.bf16 %v734, %v734
      %vm844 = vcmask 64512
      %v846 = vsel %vm844, %v836, 0
      %v849 = vsel %vm844, %v840, 0
      %851 = vmatpush.bf16.xpose.msra.mxu0 0
      %852 = vmatpush.bf16.xpose.msra.mxu0 0
      %853 = vmatpush.bf16.xpose.msra.mxu0 0
      %854 = vmatpush.bf16.xpose.msra.mxu0 0
      %855 = vmatpush.bf16.xpose.msra.mxu0 0
      %856 = vmatpush.bf16.xpose.msra.mxu0 0
      %857 = vmatpush.bf16.xpose.msra.mxu0 0
      %858 = vmatpush.bf16.xpose.msra.mxu0 %v849
      %859 = vmatmul.bf16.gmra.mxu0 %v846
      %v860 = vpop.f32.mrf.mxu0
      %v861 = vadd.f32 0.0, %v860
      %v862 = vpop.f32.mrf.mxu0
      %863 = vdwg.mxu0
      %v865 = vsel %vm844, %v837, 0
      %v868 = vsel %vm844, %v841, 0
      %870 = vmatpush.bf16.xpose.msra.mxu0 0
      %871 = vmatpush.bf16.xpose.msra.mxu0 0
      %872 = vmatpush.bf16.xpose.msra.mxu0 0
      %873 = vmatpush.bf16.xpose.msra.mxu0 0
      %874 = vmatpush.bf16.xpose.msra.mxu0 0
      %875 = vmatpush.bf16.xpose.msra.mxu0 0
      %876 = vmatpush.bf16.xpose.msra.mxu0 0
      %877 = vmatpush.bf16.xpose.msra.mxu0 %v868
      %878 = vmatmul.bf16.gmra.mxu0 %v865
      %v879 = vpop.f32.mrf.mxu0
      %v880 = vadd.f32 0.0, %v879
      %v881 = vpop.f32.mrf.mxu0
      %882 = vdwg.mxu0
      %v884 = vsel %vm844, %v838, 0
      %v887 = vsel %vm844, %v842, 0
      %889 = vmatpush.bf16.xpose.msra.mxu0 0
      %890 = vmatpush.bf16.xpose.msra.mxu0 0
      %891 = vmatpush.bf16.xpose.msra.mxu0 0
      %892 = vmatpush.bf16.xpose.msra.mxu0 0
      %893 = vmatpush.bf16.xpose.msra.mxu0 0
      %894 = vmatpush.bf16.xpose.msra.mxu0 0
      %895 = vmatpush.bf16.xpose.msra.mxu0 0
      %896 = vmatpush.bf16.xpose.msra.mxu0 %v887
      %897 = vmatmul.bf16.gmra.mxu0 %v884
      %v898 = vpop.f32.mrf.mxu0
      %v899 = vadd.f32 0.0, %v898
      %v900 = vpop.f32.mrf.mxu0
      %901 = vdwg.mxu0
      %v903 = vsel %vm844, %v839, 0
      %v906 = vsel %vm844, %v843, 0
      %908 = vmatpush.bf16.xpose.msra.mxu0 0
      %909 = vmatpush.bf16.xpose.msra.mxu0 0
      %910 = vmatpush.bf16.xpose.msra.mxu0 0
      %911 = vmatpush.bf16.xpose.msra.mxu0 0
      %912 = vmatpush.bf16.xpose.msra.mxu0 0
      %913 = vmatpush.bf16.xpose.msra.mxu0 0
      %914 = vmatpush.bf16.xpose.msra.mxu0 0
      %915 = vmatpush.bf16.xpose.msra.mxu0 %v906
      %916 = vmatmul.bf16.gmra.mxu0 %v903
      %v917 = vpop.f32.mrf.mxu0
      %v918 = vadd.f32 0.0, %v917
      %v919 = vpop.f32.mrf.mxu0
      %920 = vdwg.mxu0
      %vm921 = vcmask 36864
      %v922 = vsel %vm921, %v861, -inf
      %923 = vmax.xlane.f32.xlu0 %v922
      %v924 = vpop.xlane.xlu0 %923
      %v925 = vsel %vm921, %v880, -inf
      %926 = vmax.xlane.f32.xlu0 %v925
      %v927 = vpop.xlane.xlu0 %926
      %v928 = vsel %vm921, %v899, -inf
      %929 = vmax.xlane.f32.xlu0 %v928
      %v930 = vpop.xlane.xlu0 %929
      %v931 = vsel %vm921, %v918, -inf
      %932 = vmax.xlane.f32.xlu0 %v931
      %v933 = vpop.xlane.xlu0 %932
      %v934 = vsub.f32 %v861, %v924
      %v935 = vsub.f32 %v880, %v927
      %v936 = vsub.f32 %v899, %v930
      %v937 = vsub.f32 %v918, %v933
      %v938 = vmul.f32 %v934, 1.442695
      %v939 = vpow.pop %v938
      %v940 = vmul.f32 %v935, 1.442695
      %v941 = vpow.pop %v940
      %v942 = vmul.f32 %v936, 1.442695
      %v943 = vpow.pop %v942
      %v944 = vmul.f32 %v937, 1.442695
      %v945 = vpow.pop %v944
      %v946 = vsel %vm921, %v939, 0.0
      %947 = vadd.xlane.f32.xlu0 %v946
      %v948 = vpop.xlane.xlu0 %947
      %v949 = vsel %vm921, %v941, 0.0
      %950 = vadd.xlane.f32.xlu0 %v949
      %v951 = vpop.xlane.xlu0 %950
      %v952 = vsel %vm921, %v943, 0.0
      %953 = vadd.xlane.f32.xlu0 %v952
      %v954 = vpop.xlane.xlu0 %953
      %v955 = vsel %vm921, %v945, 0.0
      %956 = vadd.xlane.f32.xlu0 %v955
      %v957 = vpop.xlane.xlu0 %956
      %v958 = vrcp.pop %v948
      %v959 = vmul.f32 %v948, %v958
      %v960 = vsub.f32 1.0, %v959
      %v961 = vmul.f32 %v958, %v960
      %v962 = vadd.f32 %v958, %v961
      %vm963 = vweird.f32 %v948
      %vm964 = vweird.f32 %v958
      %vm965 = vmor %vm963, %vm964
      %v966 = vsel %vm965, %v958, %v962
      %v967 = vand.u32 2147483647, %v948
      %vm968 = vcmp.eq.f32.partialorder %v967, 8.507059e+37
      %v969 = vand.u32 %v948, 2147483648
      %v970 = vor.u32 1.1754944e-38, %v969
      %v971 = vsel %vm968, %v970, %v966
      %v972 = vmul.f32 %v939, %v971
      %v973 = vrcp.pop %v951
      %v974 = vmul.f32 %v951, %v973
      %v975 = vsub.f32 1.0, %v974
      %v976 = vmul.f32 %v973, %v975
      %v977 = vadd.f32 %v973, %v976
      %vm978 = vweird.f32 %v951
      %vm979 = vweird.f32 %v973
      %vm980 = vmor %vm978, %vm979
      %v981 = vsel %vm980, %v973, %v977
      %v982 = vand.u32 2147483647, %v951
      %vm983 = vcmp.eq.f32.partialorder %v982, 8.507059e+37
      %v984 = vand.u32 %v951, 2147483648
      %v985 = vor.u32 1.1754944e-38, %v984
      %v986 = vsel %vm983, %v985, %v981
      %v987 = vmul.f32 %v941, %v986
      %v988 = vrcp.pop %v954
      %v989 = vmul.f32 %v954, %v988
      %v990 = vsub.f32 1.0, %v989
      %v991 = vmul.f32 %v988, %v990
      %v992 = vadd.f32 %v988, %v991
      %vm993 = vweird.f32 %v954
      %vm994 = vweird.f32 %v988
      %vm995 = vmor %vm993, %vm994
      %v996 = vsel %vm995, %v988, %v992
      %v997 = vand.u32 2147483647, %v954
      %vm998 = vcmp.eq.f32.partialorder %v997, 8.507059e+37
      %v999 = vand.u32 %v954, 2147483648
      %v1000 = vor.u32 1.1754944e-38, %v999
      %v1001 = vsel %vm998, %v1000, %v996
      %v1002 = vmul.f32 %v943, %v1001
      %v1003 = vrcp.pop %v957
      %v1004 = vmul.f32 %v957, %v1003
      %v1005 = vsub.f32 1.0, %v1004
      %v1006 = vmul.f32 %v1003, %v1005
      %v1007 = vadd.f32 %v1003, %v1006
      %vm1008 = vweird.f32 %v957
      %vm1009 = vweird.f32 %v1003
      %vm1010 = vmor %vm1008, %vm1009
      %v1011 = vsel %vm1010, %v1003, %v1007
      %v1012 = vand.u32 2147483647, %v957
      %vm1013 = vcmp.eq.f32.partialorder %v1012, 8.507059e+37
      %v1014 = vand.u32 %v957, 2147483648
      %v1015 = vor.u32 1.1754944e-38, %v1014
      %v1016 = vsel %vm1013, %v1015, %v1011
      %v1017 = vmul.f32 %v945, %v1016
      %v1018 = vpack.c.bf16 %v972, %v972
      %v1019 = vpack.c.bf16 %v987, %v987
      %v1020 = vpack.c.bf16 %v1002, %v1002
      %v1021 = vpack.c.bf16 %v1017, %v1017
      %v1022 = vpack.c.bf16 %v829, %v829
      %v1023 = vpack.c.bf16 %v831, %v831
      %v1024 = vpack.c.bf16 %v833, %v833
      %v1025 = vpack.c.bf16 %v835, %v835
      %vm1026 = vcmask 39936
      %v1028 = vsel %vm1026, %v1018, 0
      %vm1030 = vcmask 1041408
      %vm1031 = vcmask 1042432
      %v1032 = vsel %vm1030, 4294967295, 65535
      %v1033 = vsel %vm1031, %v1032, 0
      %v1035 = vand.u32 %v1022, %v1033
      %1037 = vmatpush.bf16.msra.mxu0 0
      %1038 = vmatpush.bf16.msra.mxu0 0
      %1039 = vmatpush.bf16.msra.mxu0 0
      %1040 = vmatpush.bf16.msra.mxu0 0
      %1041 = vmatpush.bf16.msra.mxu0 0
      %1042 = vmatpush.bf16.msra.mxu0 0
      %1043 = vmatpush.bf16.msra.mxu0 0
      %1044 = vmatpush.bf16.msra.mxu0 %v1035
      %1045 = vmatmul.bf16.gmra.mxu0 %v1028
      %v1046 = vpop.f32.mrf.mxu0
      %v1047 = vadd.f32 0.0, %v1046
      %v1048 = vpop.f32.mrf.mxu0
      %1049 = vdwg.mxu0
      %v1051 = vsel %vm1026, %v1019, 0
      %v1054 = vand.u32 %v1023, %v1033
      %1056 = vmatpush.bf16.msra.mxu0 0
      %1057 = vmatpush.bf16.msra.mxu0 0
      %1058 = vmatpush.bf16.msra.mxu0 0
      %1059 = vmatpush.bf16.msra.mxu0 0
      %1060 = vmatpush.bf16.msra.mxu0 0
      %1061 = vmatpush.bf16.msra.mxu0 0
      %1062 = vmatpush.bf16.msra.mxu0 0
      %1063 = vmatpush.bf16.msra.mxu0 %v1054
      %1064 = vmatmul.bf16.gmra.mxu0 %v1051
      %v1065 = vpop.f32.mrf.mxu0
      %v1066 = vadd.f32 0.0, %v1065
      %v1067 = vpop.f32.mrf.mxu0
      %1068 = vdwg.mxu0
      %v1070 = vsel %vm1026, %v1020, 0
      %v1073 = vand.u32 %v1024, %v1033
      %1075 = vmatpush.bf16.msra.mxu0 0
      %1076 = vmatpush.bf16.msra.mxu0 0
      %1077 = vmatpush.bf16.msra.mxu0 0
      %1078 = vmatpush.bf16.msra.mxu0 0
      %1079 = vmatpush.bf16.msra.mxu0 0
      %1080 = vmatpush.bf16.msra.mxu0 0
      %1081 = vmatpush.bf16.msra.mxu0 0
      %1082 = vmatpush.bf16.msra.mxu0 %v1073
      %1083 = vmatmul.bf16.gmra.mxu0 %v1070
      %v1084 = vpop.f32.mrf.mxu0
      %v1085 = vadd.f32 0.0, %v1084
      %v1086 = vpop.f32.mrf.mxu0
      %1087 = vdwg.mxu0
      %v1089 = vsel %vm1026, %v1021, 0
      %v1092 = vand.u32 %v1025, %v1033
      %1094 = vmatpush.bf16.msra.mxu0 0
      %1095 = vmatpush.bf16.msra.mxu0 0
      %1096 = vmatpush.bf16.msra.mxu0 0
      %1097 = vmatpush.bf16.msra.mxu0 0
      %1098 = vmatpush.bf16.msra.mxu0 0
      %1099 = vmatpush.bf16.msra.mxu0 0
      %1100 = vmatpush.bf16.msra.mxu0 0
      %1101 = vmatpush.bf16.msra.mxu0 %v1092
      %1102 = vmatmul.bf16.gmra.mxu0 %v1089
      %v1103 = vpop.f32.mrf.mxu0
      %v1104 = vadd.f32 0.0, %v1103
      %v1105 = vpop.f32.mrf.mxu0
      %1106 = vdwg.mxu0
      %v1107 = vrot.slane %v1085, 4
      %v1108 = vsel %vm543, %v1107, %v1047
      %v1109 = vrot.slane %v1047, 4
      %v1110 = vsel %vm543, %v1085, %v1109
      %v1112 = vunpack.c.l.s4 1983009808
      %v1113 = vunpack.c.0.s8 %v1112
      %v1114 = vperm.slane %v1108, %v1113
      %v1116 = vunpack.c.l.s4 1983009808
      %v1117 = vunpack.c.0.s8 %v1116
      %v1118 = vperm.slane %v1110, %v1117
      %v1119 = vrot.slane %v1104, 4
      %v1120 = vsel %vm543, %v1119, %v1066
      %v1121 = vrot.slane %v1066, 4
      %v1122 = vsel %vm543, %v1104, %v1121
      %v1124 = vunpack.c.l.s4 1983009808
      %v1125 = vunpack.c.0.s8 %v1124
      %v1126 = vperm.slane %v1120, %v1125
      %v1128 = vunpack.c.l.s4 1983009808
      %v1129 = vunpack.c.0.s8 %v1128
      %v1130 = vperm.slane %v1122, %v1129
      %v1131 = vrot.slane %v1126, 4
      %v1132 = vsel %vm543, %v1131, %v1114
      %v1133 = vrot.slane %v1114, 4
      %v1134 = vsel %vm543, %v1126, %v1133
      %v1136 = vunpack.c.l.s4 1934713408
      %v1137 = vunpack.c.0.s8 %v1136
      %v1138 = vperm.slane %v1132, %v1137
      %v1140 = vunpack.c.l.s4 1934713408
      %v1141 = vunpack.c.0.s8 %v1140
      %v1142 = vperm.slane %v1134, %v1141
      %v1143 = vrot.slane %v1130, 4
      %v1144 = vsel %vm543, %v1143, %v1118
      %v1145 = vrot.slane %v1138, 4
      %v1146 = vsel %vm543, 0.0, %v1145
      %v1147 = vrot.slane %v1142, 4
      %v1148 = vsel %vm543, 0.0, %v1147
      %v1149 = vsel %vm543, %v1147, %v1138
      %v1151 = vunpack.c.l.s4 1983009808
      %v1152 = vunpack.c.0.s8 %v1151
      %v1153 = vperm.slane %v1149, %v1152
      %v1154 = vrot.slane %v1148, 4
      %v1155 = vsel %vm543, %v1154, %v1146
      %v1157 = vunpack.c.l.s4 1983009808
      %v1158 = vunpack.c.0.s8 %v1157
      %v1159 = vperm.slane %v1155, %v1158
      %v1161 = vunpack.c.l.s4 1934713408
      %v1162 = vunpack.c.0.s8 %v1161
      %v1163 = vperm.slane %v1144, %v1162
      %v1165 = vunpack.c.l.s4 1983009808
      %v1166 = vunpack.c.0.s8 %v1165
      %v1167 = vperm.slane %v1163, %v1166
      %v1168 = vrot.slane %v1159, 4
      %v1169 = vsel %vm543, %v1168, %v1153
      %v1170 = vrot.slane %v1153, 4
      %v1171 = vsel %vm543, %v1159, %v1170
      %v1173 = vunpack.c.l.s4 1934713408
      %v1174 = vunpack.c.0.s8 %v1173
      %v1175 = vperm.slane %v1169, %v1174
      %v1177 = vunpack.c.l.s4 1934713408
      %v1178 = vunpack.c.0.s8 %v1177
      %v1179 = vperm.slane %v1171, %v1178
      %v1180 = vrot.slane %v1167, 4
      %v1181 = vsel %vm543, 0.0, %v1180
      %v1183 = vunpack.c.l.s4 1934713408
      %v1184 = vunpack.c.0.s8 %v1183
      %v1185 = vperm.slane %v1167, %v1184
      %v1187 = vunpack.c.l.s4 1934713408
      %v1188 = vunpack.c.0.s8 %v1187
      %v1189 = vperm.slane %v1181, %v1188
      %v1190 = vrot.slane %v1185, 4
      %v1191 = vsel %vm543, %v1190, %v1175
      %v1192 = vrot.slane %v1175, 4
      %v1193 = vsel %vm543, %v1185, %v1192
      %v1194 = vrot.slane %v1189, 4
      %v1195 = vsel %vm543, %v1194, %v1179
      %v1196 = vrot.slane %v1179, 4
      %v1197 = vsel %vm543, %v1189, %v1196
      %1199 = vrot.lane.b32.xlu0 %v1193, 8
      %v1200 = vpop.permute.xlu0 %1199
      %1203 = vrot.lane.b32.xlu0 %v1195, 16
      %v1204 = vpop.permute.xlu0 %1203
      %1207 = vrot.lane.b32.xlu0 %v1197, 24
      %v1208 = vpop.permute.xlu0 %1207
      %v1210 = vsel %vm844, %v1191, %v1200
      %vm1211 = vcmask 130048
      %v1212 = vsel %vm1211, %v1210, %v1204
      %vm1213 = vcmask 195584
      %v1214 = vsel %vm1213, %v1212, %v1208
      %v1215 = vld [vmem:[#allocation2] sm:$0x1f]
      %v1216 = vpack.c.bf16 %v1214, %v1214
      %v1217 = vld [vmem:[%s380] sm:$0xf]
      %v1218 = vld [vmem:[%s380 + $0x4] sm:$0xf]
      %v1219 = vld [vmem:[%s380 + $0x8] sm:$0xf]
      %v1220 = vld [vmem:[%s380 + $0xc] sm:$0xf]
      %v1225 = vunpack.c.l.b16 %v1217
      %v1226 = vunpack.c.l.b16 %v1218
      %v1227 = vunpack.c.l.b16 %v1219
      %v1228 = vunpack.c.l.b16 %v1220
      %v1229 = vpack.c.b16 %v1226, %v1225
      %v1230 = vpack.c.b16 %v1228, %v1227
      %v1234 = vsel %vm457, %v1216, 0
      %1236 = vmatpush.bf16.msra.mxu0 0
      %1237 = vmatpush.bf16.msra.mxu0 0
      %1238 = vmatpush.bf16.msra.mxu0 0
      %1239 = vmatpush.bf16.msra.mxu0 0
      %1240 = vmatpush.bf16.msra.mxu0 0
      %1241 = vmatpush.bf16.msra.mxu0 0
      %1242 = vmatpush.bf16.msra.mxu0 %v1230
      %1243 = vmatpush.bf16.msra.mxu0 %v1229
      %1244 = vmatmul.bf16.gmra.mxu0 %v1234
      %v1245 = vpop.f32.mrf.mxu0
      %v1246 = vadd.f32 0.0, %v1245
      %v1247 = vpop.f32.mrf.mxu0
      %1248 = vdwg.mxu0
      %v1249 = vadd.f32 %v1215, %v1246
      %1250 = vst.msk [vmem:[#allocation2] sm:$0x1f] %vm402, %v1249
      // Predicated region
      $region57: #{vit_forward.7} parent=51 // pred_check
        %p1251 = pneg %p389
      $region58: #{vit_forward.7} parent=51 // pred_check_branch
        %1253 = sbr.rel (%p1251) target = $region60
      $region59: #{vit_forward.7} parent=51 // pred_region
        %v1254 = vld [vmem:[#allocation2] sm:$0x1f]
        %v1255 = vpack.c.bf16 %v1254, %v1254
        %vm1256 = vcmask 256000
        %vm1257 = vsmask.f32 2304
        %vm1258 = vmand %vm1256, %vm1257
        %v1259 = vld [vmem:[%s385] sm:$0x7]
        %v1260 = vsel %vm1258, %v1255, %v1259
        %1261 = vst [vmem:[%s385] sm:$0x7] %v1260
      $region60: #{vit_forward.7} parent=51 // pred_fallthru
        _
      %p1262 = scmp.lt.s32.totalorder %s23, 1
      %s1263 = scalar_select %p1262, %s23, 1
      %s1264 = smul.addr %s1263, 4
      %s1265 = scalar_lea.vmem %s8, %s1264
      // Predicated region
      $region61: #{vit_forward.7} parent=51 // pred_check
        %p1266 = pneg %p242
      $region62: #{vit_forward.7} parent=51 // pred_check_branch
        %1268 = sbr.rel (%p1266) target = $region64
      $region63: #{vit_forward.7} parent=51 // pred_region
        _
      $region64: #{vit_forward.7} parent=51 // pred_fallthru
        _
    $region52: #{vit_forward.7} parent=5 // pred_fallthru
      _
    %p1269 = scmp.le.s32.totalorder 2, %s14
    // Predicated region
    $region65: #{vit_forward.7} parent=5 // pred_check
      %p1270 = pneg %p1269
    $region66: #{vit_forward.7} parent=5 // pred_check_branch
      %1272 = sbr.rel (%p1270) target = $region68
    $region67: #{vit_forward.7} parent=5 // pred_region
      %s1273 = ssub.s32 %s14, 2
      // Predicated region
      $region69: #{vit_forward.7} parent=67 // pred_check
        %p1274 = pneg %p248
      $region70: #{vit_forward.7} parent=67 // pred_check_branch
        %1276 = sbr.rel (%p1274) target = $region72
      $region71: #{vit_forward.7} parent=67 // pred_region
        %p1277 = scmp.lt.s32.totalorder %s25, 1
        %s1278 = scalar_select %p1277, %s25, 1
        %s1279 = smul.addr %s1278, 4
        %s1280 = scalar_lea.vmem %s8, %s1279
      $region72: #{vit_forward.7} parent=67 // pred_fallthru
        _
    $region68: #{vit_forward.7} parent=5 // pred_fallthru
      _
  $region6: #{vit_forward.7} parent=0 // loop_footer
    %s18 = sadd.s32 1, %s14
  $region7: #{vit_forward.7} parent=0 // loop_footer_branch
    %13 = sbr.rel target = $region3
  $region8: #{vit_forward.7} parent=0 // loop_exit
    _

</llo_original>
